<compile_context>
chip_gen: v7x
topology: tpu7x:2x2x1
jax: 0.10.0
libtpu: 0.0.40
codegen_flags: <defaults>
</compile_context>

<pallas_src>
import functools

import jax
import jax.numpy as jnp
from jax.experimental import pallas as pl
from jax.experimental.pallas import tpu as pltpu

_EPS = 1e-5  # BatchNorm2d default eps

# ConvTranspose2d(k=4, stride=2, padding=1) subpixel tap table.
# Output row oh = 2*mh + r draws from padded input row (mh + dh) with kernel
# row kh, for (dh, kh) in _TAPS[r]; columns behave identically.
_TAPS = {0: ((1, 1), (0, 3)), 1: ((2, 0), (1, 2))}
_SUBPIXELS = ((0, 0), (0, 1), (1, 0), (1, 1))  # p = 2*r + s


def _round_up(x, m):
    return (x + m - 1) // m * m


_VMEM_LIMIT_CACHE = None


def _vmem_limit():
    """Generation-aware scoped VMEM limit: ~3/4 of physical VMEM (64 MiB/TC on
    v7x vs 128 MiB on v5e/v6e), capped at 100 MiB."""
    global _VMEM_LIMIT_CACHE
    if _VMEM_LIMIT_CACHE is None:
        try:
            cap = int(pltpu.get_tpu_info().vmem_capacity_bytes)
            _VMEM_LIMIT_CACHE = int(min(100 * 2**20, (cap * 3) // 4))
        except Exception:
            _VMEM_LIMIT_CACHE = 32 * 2**20
    return _VMEM_LIMIT_CACHE


# ---------------------------------------------------------------------------
# Kernels
# ---------------------------------------------------------------------------
def _fold_taps(x_ref, w_ref, offs9, s_out):
    """Stack the 9 tap views of the padded flat input into one (9*Cin, S) RHS
    and run a SINGLE MXU matmul against the fused (4*Cout, 9*Cin) weight."""
    x = x_ref[0].astype(jnp.float32)                      # (Cin, Sp_in)
    rhs = jnp.concatenate([x[:, o:o + s_out] for o in offs9], axis=0)
    return jnp.dot(w_ref[...], rhs, preferred_element_type=jnp.float32)


def _deconv_stats_kernel(x_ref, w_ref, mask_ref, sum_ref, ssq_ref, *,
                         offs9, s_out, inv_count):
    """Pass 1: folded deconv matmul + masked per-(subpixel, channel) sum and
    CENTERED sum-of-squares.  No activation is written to HBM."""
    y = _fold_taps(x_ref, w_ref, offs9, s_out)            # (4*Cout, S) f32
    mask = mask_ref[...]                                   # (1, S) f32
    rsum = jnp.sum(y * mask, axis=-1, keepdims=True)       # (4*Cout, 1)
    cent = (y - rsum * inv_count) * mask
    sum_ref[0] = rsum
    ssq_ref[0] = jnp.sum(cent * cent, axis=-1, keepdims=True)


def _deconv_bn_relu_kernel(x_ref, w_ref, scale_ref, shift_ref, o_ref, *,
                           offs9, s_out):
    """Pass 2 (intermediate block): recompute deconv, BN scale/shift, ReLU."""
    y = _fold_taps(x_ref, w_ref, offs9, s_out)
    o_ref[0] = jnp.maximum(y * scale_ref[...] + shift_ref[...],
                           0.0).astype(o_ref.dtype)


def _deconv_bn_relu_rgb_kernel(x_ref, w_ref, scale_ref, shift_ref,
                               wrgb_ref, brgb_ref, o_ref, *, offs9, s_out):
    """Pass 2 (last block): recompute deconv, BN + ReLU, fused block-diagonal
    1x1 conv to RGB (+ bias); 12-sublane output."""
    y = _fold_taps(x_ref, w_ref, offs9, s_out)
    a = jnp.maximum(y * scale_ref[...] + shift_ref[...], 0.0)       # (4*C, S)
    o_ref[0] = (jnp.dot(wrgb_ref[...], a, preferred_element_type=jnp.float32)
                + brgb_ref[...])


# ---------------------------------------------------------------------------
# pallas_call wrappers
# ---------------------------------------------------------------------------
def _deconv_stats(xp, wf, mask, offs9, s_out, inv_count):
    n, cin, sp_in = xp.shape
    rows = wf.shape[0]
    kernel = functools.partial(_deconv_stats_kernel, offs9=offs9, s_out=s_out,
                               inv_count=inv_count)
    return pl.pallas_call(
        kernel,
        out_shape=(jax.ShapeDtypeStruct((n, rows, 1), jnp.float32),
                   jax.ShapeDtypeStruct((n, rows, 1), jnp.float32)),
        grid=(n,),
        in_specs=[
            pl.BlockSpec((1, cin, sp_in), lambda i: (i, 0, 0)),
            pl.BlockSpec((rows, wf.shape[1]), lambda i: (0, 0)),
            pl.BlockSpec((1, s_out), lambda i: (0, 0)),
        ],
        out_specs=(
            pl.BlockSpec((1, rows, 1), lambda i: (i, 0, 0)),
            pl.BlockSpec((1, rows, 1), lambda i: (i, 0, 0)),
        ),
        compiler_params=pltpu.CompilerParams(
            dimension_semantics=("parallel",),
            vmem_limit_bytes=_vmem_limit()),
    )(xp, wf, mask)


def _deconv_bn_relu(xp, wf, scale4, shift4, offs9, s_out):
    n, cin, sp_in = xp.shape
    rows = wf.shape[0]
    kernel = functools.partial(_deconv_bn_relu_kernel, offs9=offs9, s_out=s_out)
    return pl.pallas_call(
        kernel,
        out_shape=jax.ShapeDtypeStruct((n, rows, s_out), jnp.bfloat16),
        grid=(n,),
        in_specs=[
            pl.BlockSpec((1, cin, sp_in), lambda i: (i, 0, 0)),
            pl.BlockSpec((rows, wf.shape[1]), lambda i: (0, 0)),
            pl.BlockSpec((rows, 1), lambda i: (0, 0)),
            pl.BlockSpec((rows, 1), lambda i: (0, 0)),
        ],
        out_specs=pl.BlockSpec((1, rows, s_out), lambda i: (i, 0, 0)),
        compiler_params=pltpu.CompilerParams(
            dimension_semantics=("parallel",),
            vmem_limit_bytes=_vmem_limit()),
    )(xp, wf, scale4, shift4)


def _deconv_bn_relu_rgb(xp, wf, scale4, shift4, wblk, bblk, offs9, s_out):
    n, cin, sp_in = xp.shape
    rows = wf.shape[0]
    krows = wblk.shape[0]
    kernel = functools.partial(_deconv_bn_relu_rgb_kernel, offs9=offs9,
                               s_out=s_out)
    return pl.pallas_call(
        kernel,
        out_shape=jax.ShapeDtypeStruct((n, krows, s_out), jnp.float32),
        grid=(n,),
        in_specs=[
            pl.BlockSpec((1, cin, sp_in), lambda i: (i, 0, 0)),
            pl.BlockSpec((rows, wf.shape[1]), lambda i: (0, 0)),
            pl.BlockSpec((rows, 1), lambda i: (0, 0)),
            pl.BlockSpec((rows, 1), lambda i: (0, 0)),
            pl.BlockSpec((krows, wblk.shape[1]), lambda i: (0, 0)),
            pl.BlockSpec((krows, 1), lambda i: (0, 0)),
        ],
        out_specs=pl.BlockSpec((1, krows, s_out), lambda i: (i, 0, 0)),
        compiler_params=pltpu.CompilerParams(
            dimension_semantics=("parallel",),
            vmem_limit_bytes=_vmem_limit()),
    )(xp, wf, scale4, shift4, wblk, bblk)


# ---------------------------------------------------------------------------
# JAX-side glue (layout plumbing + tiny stat reductions; math is in-kernel)
# ---------------------------------------------------------------------------
def _to_padded_flat(x):
    """NCHW -> (N, C, Sp_in) bf16: zero-pad spatially by 1, flatten spatial
    onto lanes, round up for the tap-offset halo and lane alignment."""
    n, c, h, w = x.shape
    hp, wp = h + 2, w + 2
    s_out = _round_up(hp * wp, 128)
    sp_in = _round_up(s_out + 2 * wp + 2, 128)
    xp = jnp.pad(x, ((0, 0), (0, 0), (1, 1), (1, 1))).reshape(n, c, hp * wp)
    xp = jnp.pad(xp, ((0, 0), (0, 0), (0, sp_in - hp * wp)))
    return xp.astype(jnp.bfloat16), (h, w, hp, wp, s_out, sp_in)


def _subpixel_to_nchw(y, c, h, w, hp, wp):
    """(N, 4*C, S) subpixel-packed padded-flat -> (N, C, 2H, 2W)."""
    n = y.shape[0]
    img = y[:, :, :hp * wp].reshape(n, 2, 2, c, hp, wp)[:, :, :, :, :h, :w]
    img = jnp.transpose(img, (0, 3, 4, 1, 5, 2))          # (N, C, H, r, W, s)
    return img.reshape(n, c, 2 * h, 2 * w)


def _prep_fused_weight(w_pt, wp):
    """ConvTranspose2d weight (Cin, Cout, 4, 4) -> fused (4*Cout, 9*Cin) f32
    matrix (block-sparse over taps) + the 9 flat lane offsets dh*wp + dw."""
    cin, cout = w_pt.shape[0], w_pt.shape[1]
    offs9 = tuple(dh * wp + dw for dh in range(3) for dw in range(3))
    wf = jnp.zeros((4 * cout, 9 * cin), jnp.float32)
    for p, (r, s) in enumerate(_SUBPIXELS):
        for dh, kh in _TAPS[r]:
            for dw, kw in _TAPS[s]:
                j = 3 * dh + dw
                blk = jnp.transpose(w_pt[:, :, kh, kw]).astype(jnp.float32)
                wf = wf.at[p * cout:(p + 1) * cout,
                           j * cin:(j + 1) * cin].set(blk)
    return wf, offs9


def _block_diag_rgb(wrgb):
    """(K, C) 1x1-conv weight -> block-diagonal (4*K, 4*C), one block/subpixel."""
    k, c = wrgb.shape
    wblk = jnp.zeros((4 * k, 4 * c), jnp.float32)
    for p in range(4):
        wblk = wblk.at[p * k:(p + 1) * k, p * c:(p + 1) * c].set(wrgb)
    return wblk


def _valid_mask(h, w, hp, wp, s_out):
    m = jnp.zeros((hp, wp), jnp.float32).at[:h, :w].set(1.0)
    return jnp.pad(m.reshape(1, hp * wp), ((0, 0), (0, s_out - hp * wp)))


def ae_decoder2d(x_nchw, params):
    """Forward pass of _AEDecoder2d (training-mode BatchNorm statistics)."""
    nblocks = len(params["blocks"])
    assert nblocks >= 1
    n = x_nchw.shape[0]
    xp, (h, w, hp, wp, s_out, sp_in) = _to_padded_flat(x_nchw)

    for bi, (w_pt, gamma, beta) in enumerate(params["blocks"]):
        cout = w_pt.shape[1]
        wf, offs9 = _prep_fused_weight(w_pt, wp)
        mask = _valid_mask(h, w, hp, wp, s_out)
        cnt = float(h * w)

        # --- pass 1: per-(sample, subpixel, channel) mean / centered SSQ ----
        rsum, rssq = _deconv_stats(xp, wf, mask, offs9, s_out, 1.0 / cnt)
        gmean = (rsum[..., 0] / cnt).reshape(n, 4, cout)
        gssq = rssq[..., 0].reshape(n, 4, cout)
        # Parallel-variance combine over the 4*N equal-sized groups: robust to
        # the E[y^2]-E[y]^2 cancellation flagged in the review.
        mean = jnp.mean(gmean, axis=(0, 1))                          # (Cout,)
        var = (jnp.sum(gssq, axis=(0, 1))
               + cnt * jnp.sum(jnp.square(gmean - mean), axis=(0, 1))
               ) / (4 * n * cnt)
        scale = gamma.astype(jnp.float32) * jax.lax.rsqrt(var + _EPS)
        shift = beta.astype(jnp.float32) - mean * scale
        scale4 = jnp.tile(scale, 4).reshape(4 * cout, 1)
        shift4 = jnp.tile(shift, 4).reshape(4 * cout, 1)

        if bi == nblocks - 1:
            # --- pass 2 (last block): recompute + BN + ReLU + fused RGB -----
            k = params["rgb_w"].shape[0]
            wrgb = params["rgb_w"].reshape(k, cout).astype(jnp.float32)
            wblk = _block_diag_rgb(wrgb)
            bblk = jnp.tile(params["rgb_b"].astype(jnp.float32),
                            4).reshape(4 * k, 1)
            yrgb = _deconv_bn_relu_rgb(xp, wf, scale4, shift4, wblk, bblk,
                                       offs9, s_out)        # (N, 4K, S) f32
            return _subpixel_to_nchw(yrgb, k, h, w, hp, wp)

        # --- pass 2 (intermediate block): recompute + BN + ReLU (bf16) ------
        ysp = _deconv_bn_relu(xp, wf, scale4, shift4, offs9, s_out)
        # TODO(synk): this interleave + re-pad is the one remaining per-block
        # XLA pass over the activation (review #3).
        img = _subpixel_to_nchw(ysp, cout, h, w, hp, wp)              # bf16
        xp, (h, w, hp, wp, s_out, sp_in) = _to_padded_flat(img)

    raise AssertionError("unreachable")


# ---------------------------------------------------------------------------
# Parameters, pure-JAX reference, and self-test
# ---------------------------------------------------------------------------
def init_params(key, blocks, dimension, out_ch=3):
    params = {"blocks": []}
    cur = dimension
    for _ in range(blocks):
        key, k1, k2, k3 = jax.random.split(key, 4)
        w = jax.random.normal(k1, (cur, cur // 2, 4, 4), jnp.float32) * 0.1
        gamma = 1.0 + 0.1 * jax.random.normal(k2, (cur // 2,), jnp.float32)
        beta = 0.1 * jax.random.normal(k3, (cur // 2,), jnp.float32)
        params["blocks"].append((w, gamma, beta))
        cur //= 2
    key, k1, k2 = jax.random.split(key, 3)
    params["rgb_w"] = jax.random.normal(k1, (out_ch, cur, 1, 1),
                                        jnp.float32) * 0.1
    params["rgb_b"] = jax.random.normal(k2, (out_ch,), jnp.float32) * 0.1
    return params


def _reference(x, params):
    """Pure-JAX f32 reference of the PyTorch module (training-mode BN)."""
    h = x.astype(jnp.float32)
    for (w_pt, gamma, beta) in params["blocks"]:
        # ConvTranspose2d(k=4,s=2,p=1) == dilated conv with flipped kernel.
        w_oihw = jnp.transpose(w_pt[:, :, ::-1, ::-1], (1, 0, 2, 3))
        h = jax.lax.conv_general_dilated(
            h, w_oihw, window_strides=(1, 1), padding=((2, 2), (2, 2)),
            lhs_dilation=(2, 2), dimension_numbers=("NCHW", "OIHW", "NCHW"))
        mean = jnp.mean(h, axis=(0, 2, 3), keepdims=True)
        var = jnp.mean(jnp.square(h - mean), axis=(0, 2, 3), keepdims=True)
        h = (h - mean) * jax.lax.rsqrt(var + _EPS)
        h = jnp.maximum(h * gamma.reshape(1, -1, 1, 1)
                        + beta.reshape(1, -1, 1, 1), 0.0)
    wrgb = params["rgb_w"][:, :, 0, 0]
    return (jnp.einsum("kc,nchw->nkhw", wrgb, h)
            + params["rgb_b"].reshape(1, -1, 1, 1))


if __name__ == "__main__":
    key = jax.random.PRNGKey(0)
    kx, kp = jax.random.split(key)
    blocks, dimension = 2, 16
    # PyTorch-style NCHW input: (batch=2, channels=16, 8, 8)
    x = jax.random.normal(kx, (2, dimension, 8, 8), jnp.float32)
    params = init_params(kp, blocks, dimension)

    y = jax.jit(ae_decoder2d)(x, params)
    y = jax.block_until_ready(y)

    # 2 upsampling blocks: 8 -> 16 -> 32 spatial, channels 16 -> 8 -> 4 -> 3.
    assert y.shape == (2, 3, 32, 32), y.shape
    assert bool(jnp.all(jnp.isfinite(y)))

    # Pure-JAX f32 reference; tolerance covers bf16 HBM activation storage.
    ref = jax.block_until_ready(jax.jit(_reference)(x, params))
    err = float(jnp.max(jnp.abs(y - ref)))
    tol = 0.05 + 0.05 * float(jnp.max(jnp.abs(ref)))
    assert err <= tol, (err, tol)

    # TODO(synk): BatchNorm running_mean/running_var updates are a
    # training-time side effect with no forward output; not modeled.
    print("KERNEL_OK")
</pallas_src>

<mosaic_0001>
module attributes {stable_mosaic.version = 11 : i64} {
  func.func @_deconv_stats_kernel(%arg0: i32, %arg1: memref<1x16x256xbf16, #tpu.memory_space<vmem>>, %arg2: memref<32x144xf32, #tpu.memory_space<vmem>>, %arg3: memref<1x128xf32, #tpu.memory_space<vmem>>, %arg4: memref<1x32x1xf32, #tpu.memory_space<vmem>>, %arg5: memref<1x32x1xf32, #tpu.memory_space<vmem>>) attributes {dimension_semantics = [#tpu.dimension_semantics<parallel>], iteration_bounds = array<i64: 2>, scalar_prefetch = 0 : i64, scratch_operands = 0 : i64, tpu.core_type = #tpu.core_type<tc>, window_params = [{transform_indices = @transform_0, window_bounds = array<i64: 1, 16, 256>}, {pipeline_mode = #tpu.pipeline_mode<synchronous>, transform_indices = @transform_1, window_bounds = array<i64: 32, 144>}, {pipeline_mode = #tpu.pipeline_mode<synchronous>, transform_indices = @transform_2, window_bounds = array<i64: 1, 128>}, {transform_indices = @transform_3, window_bounds = array<i64: 1, 32, 1>}, {transform_indices = @transform_4, window_bounds = array<i64: 1, 32, 1>}]} {
    %c0 = arith.constant 0 : index
    %c0_0 = arith.constant 0 : index
    %c0_1 = arith.constant 0 : index
    %0 = vector.load %arg1[%c0, %c0_0, %c0_1] : memref<1x16x256xbf16, #tpu.memory_space<vmem>>, vector<1x16x256xbf16>
    %1 = vector.shape_cast %0 : vector<1x16x256xbf16> to vector<16x256xbf16>
    %2 = arith.extf %1 : vector<16x256xbf16> to vector<16x256xf32>
    %3 = vector.extract_strided_slice %2 {offsets = [0, 0], sizes = [16, 128], strides = [1, 1]} : vector<16x256xf32> to vector<16x128xf32>
    %4 = vector.extract_strided_slice %2 {offsets = [0, 1], sizes = [16, 128], strides = [1, 1]} : vector<16x256xf32> to vector<16x128xf32>
    %5 = vector.extract_strided_slice %2 {offsets = [0, 2], sizes = [16, 128], strides = [1, 1]} : vector<16x256xf32> to vector<16x128xf32>
    %6 = vector.extract_strided_slice %2 {offsets = [0, 10], sizes = [16, 128], strides = [1, 1]} : vector<16x256xf32> to vector<16x128xf32>
    %7 = vector.extract_strided_slice %2 {offsets = [0, 11], sizes = [16, 128], strides = [1, 1]} : vector<16x256xf32> to vector<16x128xf32>
    %8 = vector.extract_strided_slice %2 {offsets = [0, 12], sizes = [16, 128], strides = [1, 1]} : vector<16x256xf32> to vector<16x128xf32>
    %9 = vector.extract_strided_slice %2 {offsets = [0, 20], sizes = [16, 128], strides = [1, 1]} : vector<16x256xf32> to vector<16x128xf32>
    %10 = vector.extract_strided_slice %2 {offsets = [0, 21], sizes = [16, 128], strides = [1, 1]} : vector<16x256xf32> to vector<16x128xf32>
    %11 = vector.extract_strided_slice %2 {offsets = [0, 22], sizes = [16, 128], strides = [1, 1]} : vector<16x256xf32> to vector<16x128xf32>
    %12 = tpu.concatenate %3, %4, %5, %6, %7, %8, %9, %10, %11 in 0 : vector<16x128xf32>, vector<16x128xf32>, vector<16x128xf32>, vector<16x128xf32>, vector<16x128xf32>, vector<16x128xf32>, vector<16x128xf32>, vector<16x128xf32>, vector<16x128xf32> -> vector<144x128xf32>
    %c0_2 = arith.constant 0 : index
    %c0_3 = arith.constant 0 : index
    %13 = vector.load %arg2[%c0_2, %c0_3] : memref<32x144xf32, #tpu.memory_space<vmem>>, vector<32x144xf32>
    %cst = arith.constant dense<0.000000e+00> : vector<32x128xf32>
    %14 = tpu.matmul %13, %12, %cst {dimension_numbers = #tpu.dot_dimension_numbers<[1], [0], [0], [1], [0, 0, 1, 1], [], []>} : vector<32x144xf32>, vector<144x128xf32>, vector<32x128xf32> -> vector<32x128xf32>
    %c0_4 = arith.constant 0 : index
    %c0_5 = arith.constant 0 : index
    %15 = vector.load %arg3[%c0_4, %c0_5] : memref<1x128xf32, #tpu.memory_space<vmem>>, vector<1x128xf32>
    %16 = vector.broadcast %15 : vector<1x128xf32> to vector<32x128xf32>
    %17 = arith.mulf %14, %16 : vector<32x128xf32>
    %cst_6 = arith.constant dense<0.000000e+00> : vector<32xf32>
    %18 = vector.multi_reduction <add>, %17, %cst_6 [1] : vector<32x128xf32> to vector<32xf32>
    %19 = vector.shape_cast %18 : vector<32xf32> to vector<32x1xf32>
    %cst_7 = arith.constant 1.562500e-02 : f32
    %20 = vector.broadcast %cst_7 : f32 to vector<32x1xf32>
    %21 = arith.mulf %19, %20 : vector<32x1xf32>
    %22 = vector.broadcast %21 : vector<32x1xf32> to vector<32x128xf32>
    %23 = arith.subf %14, %22 : vector<32x128xf32>
    %24 = vector.broadcast %15 : vector<1x128xf32> to vector<32x128xf32>
    %25 = arith.mulf %23, %24 : vector<32x128xf32>
    %c0_8 = arith.constant 0 : index
    %c0_9 = arith.constant 0 : index
    %c0_10 = arith.constant 0 : index
    %26 = vector.load %arg4[%c0_8, %c0_9, %c0_10] : memref<1x32x1xf32, #tpu.memory_space<vmem>>, vector<1x32x1xf32>
    %27 = vector.shape_cast %26 : vector<1x32x1xf32> to vector<32x1xf32>
    %28 = vector.shape_cast %19 : vector<32x1xf32> to vector<1x32x1xf32>
    tpu.vector_store %arg4[%c0_8, %c0_9, %c0_10], %28 {strides = array<i32>} : memref<1x32x1xf32, #tpu.memory_space<vmem>>, vector<1x32x1xf32>,
    %29 = arith.mulf %25, %25 : vector<32x128xf32>
    %cst_11 = arith.constant dense<0.000000e+00> : vector<32xf32>
    %30 = vector.multi_reduction <add>, %29, %cst_11 [1] : vector<32x128xf32> to vector<32xf32>
    %31 = vector.shape_cast %30 : vector<32xf32> to vector<32x1xf32>
    %c0_12 = arith.constant 0 : index
    %c0_13 = arith.constant 0 : index
    %c0_14 = arith.constant 0 : index
    %32 = vector.load %arg5[%c0_12, %c0_13, %c0_14] : memref<1x32x1xf32, #tpu.memory_space<vmem>>, vector<1x32x1xf32>
    %33 = vector.shape_cast %32 : vector<1x32x1xf32> to vector<32x1xf32>
    %34 = vector.shape_cast %31 : vector<32x1xf32> to vector<1x32x1xf32>
    tpu.vector_store %arg5[%c0_12, %c0_13, %c0_14], %34 {strides = array<i32>} : memref<1x32x1xf32, #tpu.memory_space<vmem>>, vector<1x32x1xf32>,
    return
  }
  func.func @transform_0(%arg0: i32) -> (i32, i32, i32) {
    %c0_i32 = arith.constant 0 : i32
    %c0_i32_0 = arith.constant 0 : i32
    %c0_i32_1 = arith.constant 0 : i32
    return %arg0, %c0_i32, %c0_i32_0 : i32, i32, i32
  }
  func.func @transform_1(%arg0: i32) -> (i32, i32) {
    %c0_i32 = arith.constant 0 : i32
    %c0_i32_0 = arith.constant 0 : i32
    %c0_i32_1 = arith.constant 0 : i32
    return %c0_i32, %c0_i32_0 : i32, i32
  }
  func.func @transform_2(%arg0: i32) -> (i32, i32) {
    %c0_i32 = arith.constant 0 : i32
    %c0_i32_0 = arith.constant 0 : i32
    %c0_i32_1 = arith.constant 0 : i32
    return %c0_i32, %c0_i32_0 : i32, i32
  }
  func.func @transform_3(%arg0: i32) -> (i32, i32, i32) {
    %c0_i32 = arith.constant 0 : i32
    %c0_i32_0 = arith.constant 0 : i32
    %c0_i32_1 = arith.constant 0 : i32
    return %arg0, %c0_i32, %c0_i32_0 : i32, i32, i32
  }
  func.func @transform_4(%arg0: i32) -> (i32, i32, i32) {
    %c0_i32 = arith.constant 0 : i32
    %c0_i32_0 = arith.constant 0 : i32
    %c0_i32_1 = arith.constant 0 : i32
    return %arg0, %c0_i32, %c0_i32_0 : i32, i32, i32
  }
}

module attributes {stable_mosaic.version = 11 : i64} {
  func.func @_deconv_bn_relu_kernel(%arg0: i32, %arg1: memref<1x16x256xbf16, #tpu.memory_space<vmem>>, %arg2: memref<32x144xf32, #tpu.memory_space<vmem>>, %arg3: memref<32x1xf32, #tpu.memory_space<vmem>>, %arg4: memref<32x1xf32, #tpu.memory_space<vmem>>, %arg5: memref<1x32x128xbf16, #tpu.memory_space<vmem>>) attributes {dimension_semantics = [#tpu.dimension_semantics<parallel>], iteration_bounds = array<i64: 2>, scalar_prefetch = 0 : i64, scratch_operands = 0 : i64, tpu.core_type = #tpu.core_type<tc>, window_params = [{transform_indices = @transform_0, window_bounds = array<i64: 1, 16, 256>}, {pipeline_mode = #tpu.pipeline_mode<synchronous>, transform_indices = @transform_1, window_bounds = array<i64: 32, 144>}, {pipeline_mode = #tpu.pipeline_mode<synchronous>, transform_indices = @transform_2, window_bounds = array<i64: 32, 1>}, {pipeline_mode = #tpu.pipeline_mode<synchronous>, transform_indices = @transform_3, window_bounds = array<i64: 32, 1>}, {transform_indices = @transform_4, window_bounds = array<i64: 1, 32, 128>}]} {
    %c0 = arith.constant 0 : index
    %c0_0 = arith.constant 0 : index
    %c0_1 = arith.constant 0 : index
    %0 = vector.load %arg1[%c0, %c0_0, %c0_1] : memref<1x16x256xbf16, #tpu.memory_space<vmem>>, vector<1x16x256xbf16>
    %1 = vector.shape_cast %0 : vector<1x16x256xbf16> to vector<16x256xbf16>
    %2 = arith.extf %1 : vector<16x256xbf16> to vector<16x256xf32>
    %3 = vector.extract_strided_slice %2 {offsets = [0, 0], sizes = [16, 128], strides = [1, 1]} : vector<16x256xf32> to vector<16x128xf32>
    %4 = vector.extract_strided_slice %2 {offsets = [0, 1], sizes = [16, 128], strides = [1, 1]} : vector<16x256xf32> to vector<16x128xf32>
    %5 = vector.extract_strided_slice %2 {offsets = [0, 2], sizes = [16, 128], strides = [1, 1]} : vector<16x256xf32> to vector<16x128xf32>
    %6 = vector.extract_strided_slice %2 {offsets = [0, 10], sizes = [16, 128], strides = [1, 1]} : vector<16x256xf32> to vector<16x128xf32>
    %7 = vector.extract_strided_slice %2 {offsets = [0, 11], sizes = [16, 128], strides = [1, 1]} : vector<16x256xf32> to vector<16x128xf32>
    %8 = vector.extract_strided_slice %2 {offsets = [0, 12], sizes = [16, 128], strides = [1, 1]} : vector<16x256xf32> to vector<16x128xf32>
    %9 = vector.extract_strided_slice %2 {offsets = [0, 20], sizes = [16, 128], strides = [1, 1]} : vector<16x256xf32> to vector<16x128xf32>
    %10 = vector.extract_strided_slice %2 {offsets = [0, 21], sizes = [16, 128], strides = [1, 1]} : vector<16x256xf32> to vector<16x128xf32>
    %11 = vector.extract_strided_slice %2 {offsets = [0, 22], sizes = [16, 128], strides = [1, 1]} : vector<16x256xf32> to vector<16x128xf32>
    %12 = tpu.concatenate %3, %4, %5, %6, %7, %8, %9, %10, %11 in 0 : vector<16x128xf32>, vector<16x128xf32>, vector<16x128xf32>, vector<16x128xf32>, vector<16x128xf32>, vector<16x128xf32>, vector<16x128xf32>, vector<16x128xf32>, vector<16x128xf32> -> vector<144x128xf32>
    %c0_2 = arith.constant 0 : index
    %c0_3 = arith.constant 0 : index
    %13 = vector.load %arg2[%c0_2, %c0_3] : memref<32x144xf32, #tpu.memory_space<vmem>>, vector<32x144xf32>
    %cst = arith.constant dense<0.000000e+00> : vector<32x128xf32>
    %14 = tpu.matmul %13, %12, %cst {dimension_numbers = #tpu.dot_dimension_numbers<[1], [0], [0], [1], [0, 0, 1, 1], [], []>} : vector<32x144xf32>, vector<144x128xf32>, vector<32x128xf32> -> vector<32x128xf32>
    %c0_4 = arith.constant 0 : index
    %c0_5 = arith.constant 0 : index
    %15 = vector.load %arg3[%c0_4, %c0_5] : memref<32x1xf32, #tpu.memory_space<vmem>>, vector<32x1xf32>
    %16 = vector.broadcast %15 : vector<32x1xf32> to vector<32x128xf32>
    %17 = arith.mulf %14, %16 : vector<32x128xf32>
    %c0_6 = arith.constant 0 : index
    %c0_7 = arith.constant 0 : index
    %18 = vector.load %arg4[%c0_6, %c0_7] : memref<32x1xf32, #tpu.memory_space<vmem>>, vector<32x1xf32>
    %19 = vector.broadcast %18 : vector<32x1xf32> to vector<32x128xf32>
    %20 = arith.addf %17, %19 : vector<32x128xf32>
    %cst_8 = arith.constant 0.000000e+00 : f32
    %21 = vector.broadcast %cst_8 : f32 to vector<32x128xf32>
    %22 = arith.maximumf %20, %21 : vector<32x128xf32>
    %23 = arith.truncf %22 : vector<32x128xf32> to vector<32x128xbf16>
    %c0_9 = arith.constant 0 : index
    %c0_10 = arith.constant 0 : index
    %c0_11 = arith.constant 0 : index
    %24 = vector.load %arg5[%c0_9, %c0_10, %c0_11] : memref<1x32x128xbf16, #tpu.memory_space<vmem>>, vector<1x32x128xbf16>
    %25 = vector.shape_cast %24 : vector<1x32x128xbf16> to vector<32x128xbf16>
    %26 = vector.shape_cast %23 : vector<32x128xbf16> to vector<1x32x128xbf16>
    tpu.vector_store %arg5[%c0_9, %c0_10, %c0_11], %26 {strides = array<i32>} : memref<1x32x128xbf16, #tpu.memory_space<vmem>>, vector<1x32x128xbf16>,
    return
  }
  func.func @transform_0(%arg0: i32) -> (i32, i32, i32) {
    %c0_i32 = arith.constant 0 : i32
    %c0_i32_0 = arith.constant 0 : i32
    %c0_i32_1 = arith.constant 0 : i32
    return %arg0, %c0_i32, %c0_i32_0 : i32, i32, i32
  }
  func.func @transform_1(%arg0: i32) -> (i32, i32) {
    %c0_i32 = arith.constant 0 : i32
    %c0_i32_0 = arith.constant 0 : i32
    %c0_i32_1 = arith.constant 0 : i32
    return %c0_i32, %c0_i32_0 : i32, i32
  }
  func.func @transform_2(%arg0: i32) -> (i32, i32) {
    %c0_i32 = arith.constant 0 : i32
    %c0_i32_0 = arith.constant 0 : i32
    %c0_i32_1 = arith.constant 0 : i32
    return %c0_i32, %c0_i32_0 : i32, i32
  }
  func.func @transform_3(%arg0: i32) -> (i32, i32) {
    %c0_i32 = arith.constant 0 : i32
    %c0_i32_0 = arith.constant 0 : i32
    %c0_i32_1 = arith.constant 0 : i32
    return %c0_i32, %c0_i32_0 : i32, i32
  }
  func.func @transform_4(%arg0: i32) -> (i32, i32, i32) {
    %c0_i32 = arith.constant 0 : i32
    %c0_i32_0 = arith.constant 0 : i32
    %c0_i32_1 = arith.constant 0 : i32
    return %arg0, %c0_i32, %c0_i32_0 : i32, i32, i32
  }
}

module attributes {stable_mosaic.version = 11 : i64} {
  func.func @_deconv_stats_kernel(%arg0: i32, %arg1: memref<1x8x512xbf16, #tpu.memory_space<vmem>>, %arg2: memref<16x72xf32, #tpu.memory_space<vmem>>, %arg3: memref<1x384xf32, #tpu.memory_space<vmem>>, %arg4: memref<1x16x1xf32, #tpu.memory_space<vmem>>, %arg5: memref<1x16x1xf32, #tpu.memory_space<vmem>>) attributes {dimension_semantics = [#tpu.dimension_semantics<parallel>], iteration_bounds = array<i64: 2>, scalar_prefetch = 0 : i64, scratch_operands = 0 : i64, tpu.core_type = #tpu.core_type<tc>, window_params = [{transform_indices = @transform_0, window_bounds = array<i64: 1, 8, 512>}, {pipeline_mode = #tpu.pipeline_mode<synchronous>, transform_indices = @transform_1, window_bounds = array<i64: 16, 72>}, {pipeline_mode = #tpu.pipeline_mode<synchronous>, transform_indices = @transform_2, window_bounds = array<i64: 1, 384>}, {transform_indices = @transform_3, window_bounds = array<i64: 1, 16, 1>}, {transform_indices = @transform_4, window_bounds = array<i64: 1, 16, 1>}]} {
    %c0 = arith.constant 0 : index
    %c0_0 = arith.constant 0 : index
    %c0_1 = arith.constant 0 : index
    %0 = vector.load %arg1[%c0, %c0_0, %c0_1] : memref<1x8x512xbf16, #tpu.memory_space<vmem>>, vector<1x8x512xbf16>
    %1 = vector.shape_cast %0 : vector<1x8x512xbf16> to vector<8x512xbf16>
    %2 = arith.extf %1 : vector<8x512xbf16> to vector<8x512xf32>
    %3 = vector.extract_strided_slice %2 {offsets = [0, 0], sizes = [8, 384], strides = [1, 1]} : vector<8x512xf32> to vector<8x384xf32>
    %4 = vector.extract_strided_slice %2 {offsets = [0, 1], sizes = [8, 384], strides = [1, 1]} : vector<8x512xf32> to vector<8x384xf32>
    %5 = vector.extract_strided_slice %2 {offsets = [0, 2], sizes = [8, 384], strides = [1, 1]} : vector<8x512xf32> to vector<8x384xf32>
    %6 = vector.extract_strided_slice %2 {offsets = [0, 18], sizes = [8, 384], strides = [1, 1]} : vector<8x512xf32> to vector<8x384xf32>
    %7 = vector.extract_strided_slice %2 {offsets = [0, 19], sizes = [8, 384], strides = [1, 1]} : vector<8x512xf32> to vector<8x384xf32>
    %8 = vector.extract_strided_slice %2 {offsets = [0, 20], sizes = [8, 384], strides = [1, 1]} : vector<8x512xf32> to vector<8x384xf32>
    %9 = vector.extract_strided_slice %2 {offsets = [0, 36], sizes = [8, 384], strides = [1, 1]} : vector<8x512xf32> to vector<8x384xf32>
    %10 = vector.extract_strided_slice %2 {offsets = [0, 37], sizes = [8, 384], strides = [1, 1]} : vector<8x512xf32> to vector<8x384xf32>
    %11 = vector.extract_strided_slice %2 {offsets = [0, 38], sizes = [8, 384], strides = [1, 1]} : vector<8x512xf32> to vector<8x384xf32>
    %12 = tpu.concatenate %3, %4, %5, %6, %7, %8, %9, %10, %11 in 0 : vector<8x384xf32>, vector<8x384xf32>, vector<8x384xf32>, vector<8x384xf32>, vector<8x384xf32>, vector<8x384xf32>, vector<8x384xf32>, vector<8x384xf32>, vector<8x384xf32> -> vector<72x384xf32>
    %c0_2 = arith.constant 0 : index
    %c0_3 = arith.constant 0 : index
    %13 = vector.load %arg2[%c0_2, %c0_3] : memref<16x72xf32, #tpu.memory_space<vmem>>, vector<16x72xf32>
    %cst = arith.constant dense<0.000000e+00> : vector<16x384xf32>
    %14 = tpu.matmul %13, %12, %cst {dimension_numbers = #tpu.dot_dimension_numbers<[1], [0], [0], [1], [0, 0, 1, 1], [], []>} : vector<16x72xf32>, vector<72x384xf32>, vector<16x384xf32> -> vector<16x384xf32>
    %c0_4 = arith.constant 0 : index
    %c0_5 = arith.constant 0 : index
    %15 = vector.load %arg3[%c0_4, %c0_5] : memref<1x384xf32, #tpu.memory_space<vmem>>, vector<1x384xf32>
    %16 = vector.broadcast %15 : vector<1x384xf32> to vector<16x384xf32>
    %17 = arith.mulf %14, %16 : vector<16x384xf32>
    %cst_6 = arith.constant dense<0.000000e+00> : vector<16xf32>
    %18 = vector.multi_reduction <add>, %17, %cst_6 [1] : vector<16x384xf32> to vector<16xf32>
    %19 = vector.shape_cast %18 : vector<16xf32> to vector<16x1xf32>
    %cst_7 = arith.constant 3.906250e-03 : f32
    %20 = vector.broadcast %cst_7 : f32 to vector<16x1xf32>
    %21 = arith.mulf %19, %20 : vector<16x1xf32>
    %22 = vector.broadcast %21 : vector<16x1xf32> to vector<16x384xf32>
    %23 = arith.subf %14, %22 : vector<16x384xf32>
    %24 = vector.broadcast %15 : vector<1x384xf32> to vector<16x384xf32>
    %25 = arith.mulf %23, %24 : vector<16x384xf32>
    %c0_8 = arith.constant 0 : index
    %c0_9 = arith.constant 0 : index
    %c0_10 = arith.constant 0 : index
    %26 = vector.load %arg4[%c0_8, %c0_9, %c0_10] : memref<1x16x1xf32, #tpu.memory_space<vmem>>, vector<1x16x1xf32>
    %27 = vector.shape_cast %26 : vector<1x16x1xf32> to vector<16x1xf32>
    %28 = vector.shape_cast %19 : vector<16x1xf32> to vector<1x16x1xf32>
    tpu.vector_store %arg4[%c0_8, %c0_9, %c0_10], %28 {strides = array<i32>} : memref<1x16x1xf32, #tpu.memory_space<vmem>>, vector<1x16x1xf32>,
    %29 = arith.mulf %25, %25 : vector<16x384xf32>
    %cst_11 = arith.constant dense<0.000000e+00> : vector<16xf32>
    %30 = vector.multi_reduction <add>, %29, %cst_11 [1] : vector<16x384xf32> to vector<16xf32>
    %31 = vector.shape_cast %30 : vector<16xf32> to vector<16x1xf32>
    %c0_12 = arith.constant 0 : index
    %c0_13 = arith.constant 0 : index
    %c0_14 = arith.constant 0 : index
    %32 = vector.load %arg5[%c0_12, %c0_13, %c0_14] : memref<1x16x1xf32, #tpu.memory_space<vmem>>, vector<1x16x1xf32>
    %33 = vector.shape_cast %32 : vector<1x16x1xf32> to vector<16x1xf32>
    %34 = vector.shape_cast %31 : vector<16x1xf32> to vector<1x16x1xf32>
    tpu.vector_store %arg5[%c0_12, %c0_13, %c0_14], %34 {strides = array<i32>} : memref<1x16x1xf32, #tpu.memory_space<vmem>>, vector<1x16x1xf32>,
    return
  }
  func.func @transform_0(%arg0: i32) -> (i32, i32, i32) {
    %c0_i32 = arith.constant 0 : i32
    %c0_i32_0 = arith.constant 0 : i32
    %c0_i32_1 = arith.constant 0 : i32
    return %arg0, %c0_i32, %c0_i32_0 : i32, i32, i32
  }
  func.func @transform_1(%arg0: i32) -> (i32, i32) {
    %c0_i32 = arith.constant 0 : i32
    %c0_i32_0 = arith.constant 0 : i32
    %c0_i32_1 = arith.constant 0 : i32
    return %c0_i32, %c0_i32_0 : i32, i32
  }
  func.func @transform_2(%arg0: i32) -> (i32, i32) {
    %c0_i32 = arith.constant 0 : i32
    %c0_i32_0 = arith.constant 0 : i32
    %c0_i32_1 = arith.constant 0 : i32
    return %c0_i32, %c0_i32_0 : i32, i32
  }
  func.func @transform_3(%arg0: i32) -> (i32, i32, i32) {
    %c0_i32 = arith.constant 0 : i32
    %c0_i32_0 = arith.constant 0 : i32
    %c0_i32_1 = arith.constant 0 : i32
    return %arg0, %c0_i32, %c0_i32_0 : i32, i32, i32
  }
  func.func @transform_4(%arg0: i32) -> (i32, i32, i32) {
    %c0_i32 = arith.constant 0 : i32
    %c0_i32_0 = arith.constant 0 : i32
    %c0_i32_1 = arith.constant 0 : i32
    return %arg0, %c0_i32, %c0_i32_0 : i32, i32, i32
  }
}

module attributes {stable_mosaic.version = 11 : i64} {
  func.func @_deconv_bn_relu_rgb_kernel(%arg0: i32, %arg1: memref<1x8x512xbf16, #tpu.memory_space<vmem>>, %arg2: memref<16x72xf32, #tpu.memory_space<vmem>>, %arg3: memref<16x1xf32, #tpu.memory_space<vmem>>, %arg4: memref<16x1xf32, #tpu.memory_space<vmem>>, %arg5: memref<12x16xf32, #tpu.memory_space<vmem>>, %arg6: memref<12x1xf32, #tpu.memory_space<vmem>>, %arg7: memref<1x12x384xf32, #tpu.memory_space<vmem>>) attributes {dimension_semantics = [#tpu.dimension_semantics<parallel>], iteration_bounds = array<i64: 2>, scalar_prefetch = 0 : i64, scratch_operands = 0 : i64, tpu.core_type = #tpu.core_type<tc>, window_params = [{transform_indices = @transform_0, window_bounds = array<i64: 1, 8, 512>}, {pipeline_mode = #tpu.pipeline_mode<synchronous>, transform_indices = @transform_1, window_bounds = array<i64: 16, 72>}, {pipeline_mode = #tpu.pipeline_mode<synchronous>, transform_indices = @transform_2, window_bounds = array<i64: 16, 1>}, {pipeline_mode = #tpu.pipeline_mode<synchronous>, transform_indices = @transform_3, window_bounds = array<i64: 16, 1>}, {pipeline_mode = #tpu.pipeline_mode<synchronous>, transform_indices = @transform_4, window_bounds = array<i64: 12, 16>}, {pipeline_mode = #tpu.pipeline_mode<synchronous>, transform_indices = @transform_5, window_bounds = array<i64: 12, 1>}, {transform_indices = @transform_6, window_bounds = array<i64: 1, 12, 384>}]} {
    %c0 = arith.constant 0 : index
    %c0_0 = arith.constant 0 : index
    %c0_1 = arith.constant 0 : index
    %0 = vector.load %arg1[%c0, %c0_0, %c0_1] : memref<1x8x512xbf16, #tpu.memory_space<vmem>>, vector<1x8x512xbf16>
    %1 = vector.shape_cast %0 : vector<1x8x512xbf16> to vector<8x512xbf16>
    %2 = arith.extf %1 : vector<8x512xbf16> to vector<8x512xf32>
    %3 = vector.extract_strided_slice %2 {offsets = [0, 0], sizes = [8, 384], strides = [1, 1]} : vector<8x512xf32> to vector<8x384xf32>
    %4 = vector.extract_strided_slice %2 {offsets = [0, 1], sizes = [8, 384], strides = [1, 1]} : vector<8x512xf32> to vector<8x384xf32>
    %5 = vector.extract_strided_slice %2 {offsets = [0, 2], sizes = [8, 384], strides = [1, 1]} : vector<8x512xf32> to vector<8x384xf32>
    %6 = vector.extract_strided_slice %2 {offsets = [0, 18], sizes = [8, 384], strides = [1, 1]} : vector<8x512xf32> to vector<8x384xf32>
    %7 = vector.extract_strided_slice %2 {offsets = [0, 19], sizes = [8, 384], strides = [1, 1]} : vector<8x512xf32> to vector<8x384xf32>
    %8 = vector.extract_strided_slice %2 {offsets = [0, 20], sizes = [8, 384], strides = [1, 1]} : vector<8x512xf32> to vector<8x384xf32>
    %9 = vector.extract_strided_slice %2 {offsets = [0, 36], sizes = [8, 384], strides = [1, 1]} : vector<8x512xf32> to vector<8x384xf32>
    %10 = vector.extract_strided_slice %2 {offsets = [0, 37], sizes = [8, 384], strides = [1, 1]} : vector<8x512xf32> to vector<8x384xf32>
    %11 = vector.extract_strided_slice %2 {offsets = [0, 38], sizes = [8, 384], strides = [1, 1]} : vector<8x512xf32> to vector<8x384xf32>
    %12 = tpu.concatenate %3, %4, %5, %6, %7, %8, %9, %10, %11 in 0 : vector<8x384xf32>, vector<8x384xf32>, vector<8x384xf32>, vector<8x384xf32>, vector<8x384xf32>, vector<8x384xf32>, vector<8x384xf32>, vector<8x384xf32>, vector<8x384xf32> -> vector<72x384xf32>
    %c0_2 = arith.constant 0 : index
    %c0_3 = arith.constant 0 : index
    %13 = vector.load %arg2[%c0_2, %c0_3] : memref<16x72xf32, #tpu.memory_space<vmem>>, vector<16x72xf32>
    %cst = arith.constant dense<0.000000e+00> : vector<16x384xf32>
    %14 = tpu.matmul %13, %12, %cst {dimension_numbers = #tpu.dot_dimension_numbers<[1], [0], [0], [1], [0, 0, 1, 1], [], []>} : vector<16x72xf32>, vector<72x384xf32>, vector<16x384xf32> -> vector<16x384xf32>
    %c0_4 = arith.constant 0 : index
    %c0_5 = arith.constant 0 : index
    %15 = vector.load %arg3[%c0_4, %c0_5] : memref<16x1xf32, #tpu.memory_space<vmem>>, vector<16x1xf32>
    %16 = vector.broadcast %15 : vector<16x1xf32> to vector<16x384xf32>
    %17 = arith.mulf %14, %16 : vector<16x384xf32>
    %c0_6 = arith.constant 0 : index
    %c0_7 = arith.constant 0 : index
    %18 = vector.load %arg4[%c0_6, %c0_7] : memref<16x1xf32, #tpu.memory_space<vmem>>, vector<16x1xf32>
    %19 = vector.broadcast %18 : vector<16x1xf32> to vector<16x384xf32>
    %20 = arith.addf %17, %19 : vector<16x384xf32>
    %cst_8 = arith.constant 0.000000e+00 : f32
    %21 = vector.broadcast %cst_8 : f32 to vector<16x384xf32>
    %22 = arith.maximumf %20, %21 : vector<16x384xf32>
    %c0_9 = arith.constant 0 : index
    %c0_10 = arith.constant 0 : index
    %23 = vector.load %arg5[%c0_9, %c0_10] : memref<12x16xf32, #tpu.memory_space<vmem>>, vector<12x16xf32>
    %cst_11 = arith.constant dense<0.000000e+00> : vector<12x384xf32>
    %24 = tpu.matmul %23, %22, %cst_11 {dimension_numbers = #tpu.dot_dimension_numbers<[1], [0], [0], [1], [0, 0, 1, 1], [], []>} : vector<12x16xf32>, vector<16x384xf32>, vector<12x384xf32> -> vector<12x384xf32>
    %c0_12 = arith.constant 0 : index
    %c0_13 = arith.constant 0 : index
    %25 = vector.load %arg6[%c0_12, %c0_13] : memref<12x1xf32, #tpu.memory_space<vmem>>, vector<12x1xf32>
    %26 = vector.broadcast %25 : vector<12x1xf32> to vector<12x384xf32>
    %27 = arith.addf %24, %26 : vector<12x384xf32>
    %c0_14 = arith.constant 0 : index
    %c0_15 = arith.constant 0 : index
    %c0_16 = arith.constant 0 : index
    %28 = vector.load %arg7[%c0_14, %c0_15, %c0_16] : memref<1x12x384xf32, #tpu.memory_space<vmem>>, vector<1x12x384xf32>
    %29 = vector.shape_cast %28 : vector<1x12x384xf32> to vector<12x384xf32>
    %30 = vector.shape_cast %27 : vector<12x384xf32> to vector<1x12x384xf32>
    tpu.vector_store %arg7[%c0_14, %c0_15, %c0_16], %30 {strides = array<i32>} : memref<1x12x384xf32, #tpu.memory_space<vmem>>, vector<1x12x384xf32>,
    return
  }
  func.func @transform_0(%arg0: i32) -> (i32, i32, i32) {
    %c0_i32 = arith.constant 0 : i32
    %c0_i32_0 = arith.constant 0 : i32
    %c0_i32_1 = arith.constant 0 : i32
    return %arg0, %c0_i32, %c0_i32_0 : i32, i32, i32
  }
  func.func @transform_1(%arg0: i32) -> (i32, i32) {
    %c0_i32 = arith.constant 0 : i32
    %c0_i32_0 = arith.constant 0 : i32
    %c0_i32_1 = arith.constant 0 : i32
    return %c0_i32, %c0_i32_0 : i32, i32
  }
  func.func @transform_2(%arg0: i32) -> (i32, i32) {
    %c0_i32 = arith.constant 0 : i32
    %c0_i32_0 = arith.constant 0 : i32
    %c0_i32_1 = arith.constant 0 : i32
    return %c0_i32, %c0_i32_0 : i32, i32
  }
  func.func @transform_3(%arg0: i32) -> (i32, i32) {
    %c0_i32 = arith.constant 0 : i32
    %c0_i32_0 = arith.constant 0 : i32
    %c0_i32_1 = arith.constant 0 : i32
    return %c0_i32, %c0_i32_0 : i32, i32
  }
  func.func @transform_4(%arg0: i32) -> (i32, i32) {
    %c0_i32 = arith.constant 0 : i32
    %c0_i32_0 = arith.constant 0 : i32
    %c0_i32_1 = arith.constant 0 : i32
    return %c0_i32, %c0_i32_0 : i32, i32
  }
  func.func @transform_5(%arg0: i32) -> (i32, i32) {
    %c0_i32 = arith.constant 0 : i32
    %c0_i32_0 = arith.constant 0 : i32
    %c0_i32_1 = arith.constant 0 : i32
    return %c0_i32, %c0_i32_0 : i32, i32
  }
  func.func @transform_6(%arg0: i32) -> (i32, i32, i32) {
    %c0_i32 = arith.constant 0 : i32
    %c0_i32_0 = arith.constant 0 : i32
    %c0_i32_1 = arith.constant 0 : i32
    return %arg0, %c0_i32, %c0_i32_0 : i32, i32, i32
  }
}

</mosaic_0001>

<llo_original>
// kernel: tile.48
$region0: #{tile.48}
  #allocation2 [shape = 's32[1]{0}', space=sflag, size = 0x4, scoped, tag = 'scoped memory for tile.48']
  %s0 = inlined_call_operand.hbm [shape: f32[3], index: 0, kind: input, shape index: {}]
  %s1 = inlined_call_operand.vmem [shape: f32[4,3], index: 1, kind: output, shape index: {}]
  $region1: #{tile.48} parent=0
    #allocation0 [shape = 'u8[512]{0}', space=vmem, size = 0x400, scoped, tag = 'operand span for operand 0']
    #allocation1 [shape = 's32[1]{0}', space=sflag, size = 0x4, scoped, tag = 'scoped memory for tile.48']
    %2 = vsyncpa [#allocation1], 0
    // Predicated region
    $region2: #{tile.48} parent=1 // pred_check
      _
    $region3: #{tile.48} parent=1 // pred_check_branch
      %4 = sbr.rel (0) target = $region5
    $region4: #{tile.48} parent=1 // pred_region
      %s6 = ssub.s32 16, 16
      %7 = vsyncadd [#allocation1], %s6
      %s9 = sshll.u32 [#allocation0], 4
      %s10 = int_to_ptr.vmem [resolvable:$true] %s9
      %12 = dma.hbm_to_vmem [thread:$0]  %s0, 16, %s10, [#allocation1]
    $region5: #{tile.48} parent=1 // pred_fallthru
      _
    // Predicated region
    $region6: #{tile.48} parent=1 // pred_check
      _
    $region7: #{tile.48} parent=1 // pred_check_branch
      %14 = sbr.rel (0) target = $region9
    $region8: #{tile.48} parent=1 // pred_region
      %15 = dma.done [#allocation1], 16
    $region9: #{tile.48} parent=1 // pred_fallthru
      _
    %v16 = vld [vmem:[#allocation0] ss:$0 sm:$0xff]
    %17 = vst [vmem:[%s1] sm:$0xf] %v16
    %18 = vsyncpa [#allocation1], 1

// kernel: tile.4
$region0: #{tile.4}
  %s0 = inlined_call_operand.vmem [shape: f32[4,3], index: 0, kind: input, shape index: {}]
  %s1 = inlined_call_operand.vmem [shape: f32[12,1], index: 1, kind: output, shape index: {}]
  $region1: #{tile.4} parent=0
    #allocation0 [shape = 'u8[4096]{0}', space=vmem, size = 0x1000, scoped, tag = 'scoped mem for input reshape']
    %s3 = sshllo.u32 0, 4
    %v4 = vld [vmem:[%s0] sm:%s3]
    %5 = vst [vmem:[#allocation0] sm:%s3] %v4
    %v6 = vld [vmem:[#allocation0] sm:$0xf]
    %vm7 = vcmask 7168
    %8 = vst.msk [vmem:[%s1] ss:$3 sm:$0xf] %vm7, %v6
    %v9 = vld [vmem:[#allocation0] sm:$0xf]
    %10 = vrot.lane.b32.xlu0 %v9, 127
    %v11 = vpop.permute.xlu0 %10
    %vm12 = vcmask 7168
    %s13 = scalar_lea.vmem %s1, 1
    %14 = vst.msk [vmem:[%s13] ss:$3 sm:$0xf] %vm12, %v11
    %v15 = vld [vmem:[#allocation0] sm:$0xf]
    %16 = vrot.lane.b32.xlu0 %v15, 126
    %v17 = vpop.permute.xlu0 %16
    %vm18 = vcmask 7168
    %s19 = scalar_lea.vmem %s1, 2
    %20 = vst.msk [vmem:[%s19] ss:$3 sm:$0xf] %vm18, %v17

// kernel: tile.0
$region0: #{tile.0}
  %s0 = inlined_call_operand.vmem [shape: f32[4,8], index: 0, kind: input, shape index: {}]
  %s1 = inlined_call_operand.vmem [shape: f32[32,1], index: 1, kind: output, shape index: {}]
  $region1: #{tile.0} parent=0
    #allocation0 [shape = 'u8[4096]{0}', space=vmem, size = 0x1000, scoped, tag = 'scoped mem for input reshape']
    %s3 = sshllo.u32 0, 4
    %v4 = vld [vmem:[%s0] sm:%s3]
    %5 = vst [vmem:[#allocation0] sm:%s3] %v4
    %v6 = vld [vmem:[#allocation0] sm:$0xf]
    %vm7 = vcmask 7168
    %8 = vst.msk [vmem:[%s1] ss:$8 sm:$0xf] %vm7, %v6
    %v9 = vld [vmem:[#allocation0] sm:$0xf]
    %10 = vrot.lane.b32.xlu0 %v9, 127
    %v11 = vpop.permute.xlu0 %10
    %vm12 = vcmask 7168
    %s13 = scalar_lea.vmem %s1, 1
    %14 = vst.msk [vmem:[%s13] ss:$8 sm:$0xf] %vm12, %v11
    %v15 = vld [vmem:[#allocation0] sm:$0xf]
    %16 = vrot.lane.b32.xlu0 %v15, 126
    %v17 = vpop.permute.xlu0 %16
    %vm18 = vcmask 7168
    %s19 = scalar_lea.vmem %s1, 2
    %20 = vst.msk [vmem:[%s19] ss:$8 sm:$0xf] %vm18, %v17
    %v21 = vld [vmem:[#allocation0] sm:$0xf]
    %22 = vrot.lane.b32.xlu0 %v21, 125
    %v23 = vpop.permute.xlu0 %22
    %vm24 = vcmask 7168
    %s25 = scalar_lea.vmem %s1, 3
    %26 = vst.msk [vmem:[%s25] ss:$8 sm:$0xf] %vm24, %v23
    %v27 = vld [vmem:[#allocation0] sm:$0xf]
    %28 = vrot.lane.b32.xlu0 %v27, 124
    %v29 = vpop.permute.xlu0 %28
    %vm30 = vcmask 7168
    %s31 = scalar_lea.vmem %s1, 4
    %32 = vst.msk [vmem:[%s31] ss:$8 sm:$0xf] %vm30, %v29
    %v33 = vld [vmem:[#allocation0] sm:$0xf]
    %34 = vrot.lane.b32.xlu0 %v33, 123
    %v35 = vpop.permute.xlu0 %34
    %vm36 = vcmask 7168
    %s37 = scalar_lea.vmem %s1, 5
    %38 = vst.msk [vmem:[%s37] ss:$8 sm:$0xf] %vm36, %v35
    %v39 = vld [vmem:[#allocation0] sm:$0xf]
    %40 = vrot.lane.b32.xlu0 %v39, 122
    %v41 = vpop.permute.xlu0 %40
    %vm42 = vcmask 7168
    %s43 = scalar_lea.vmem %s1, 6
    %44 = vst.msk [vmem:[%s43] ss:$8 sm:$0xf] %vm42, %v41
    %v45 = vld [vmem:[#allocation0] sm:$0xf]
    %46 = vrot.lane.b32.xlu0 %v45, 121
    %v47 = vpop.permute.xlu0 %46
    %vm48 = vcmask 7168
    %s49 = scalar_lea.vmem %s1, 7
    %50 = vst.msk [vmem:[%s49] ss:$8 sm:$0xf] %vm48, %v47

// kernel: ae_decoder2d.5
$region0: #{ae_decoder2d.5}
  #allocation0 [shape = 'u32[]', space=smem, size = 0x4, offset = 0x4, fixed_abs, tag = 'smem constant byte address 0x4 - core index']
  #allocation1 [shape = 'u32[144,128]{1,0:T(1,128)}', space=vmem, size = 0x12000, scoped, tag = 'internal scratch']
  %s0 = inlined_call_operand.vmem [shape: bf16[2,16,256], index: 0, kind: input, shape index: {}]
  %s1 = inlined_call_operand.vmem [shape: f32[32,144], index: 1, kind: input, shape index: {}]
  %s2 = inlined_call_operand.vmem [shape: f32[32,1], index: 2, kind: input, shape index: {}]
  %s3 = inlined_call_operand.vmem [shape: f32[32,1], index: 3, kind: input, shape index: {}]
  %s4 = inlined_call_operand.vmem [shape: bf16[2,32,128], index: 4, kind: output, shape index: {}]
  %s5 = sld [smem:[#allocation0]]
  $region49: #{ae_decoder2d.5} parent=0
    _
  %s7 = ssub.s32 1, %s5
  %s8 = scalar_select 0, %s7, %s5
  loop: start=0, step=1, limit=4
  $region2: #{ae_decoder2d.5} parent=0 // loop_pre_header
    _
  $region3: #{ae_decoder2d.5} parent=0 // loop_header
    %s10 = sphi 0, %s14
    %p11 = scmp.ge.s32.totalorder %s10, 4
    %s20 = sphi 0, %s22
    %s23 = sphi 0, %s20
    %s24 = sphi 0, %s23
    %s40 = sphi 0, %s24
    %s44 = sphi 0, %s44
    %s46 = sphi 0, %s44
    %s47 = sphi 0, %s46
    %s61 = sphi 0, %s47
    %s65 = sphi 0, %s65
    %s67 = sphi 0, %s65
    %s68 = sphi 0, %s67
    %s82 = sphi 0, %s68
    %s86 = sphi 0, %s86
    %s88 = sphi 0, %s86
    %s89 = sphi 0, %s88
    %s103 = sphi 0, %s89
    %s109 = sphi 0, %s111
    %s112 = sphi 0, %s109
    %s113 = sphi 0, %s112
    %s129 = sphi 0, %s113
  $region4: #{ae_decoder2d.5} parent=0 // loop_header_branch
    %13 = sbr.rel (%p11) target = $region8
  $region5: #{ae_decoder2d.5} parent=0 // loop_body
    %s15 = ssub.s32 %s10, 1
    %s16 = ssub.s32 %s10, 2
    %s17 = sadd.s32 %s10, 1
    %s18 = ssub.s32 %s10, %s17
    %p19 = scmp.eq.s32.totalorder %s18, 0
    %s21 = sadd.s32 %s20, 1
    %s22 = scalar_select %p19, %s20, %s21
    %p25 = pneg %p19
    %p26 = scmp.eq.s32.totalorder %s10, 1
    %p27 = por %p25, %p26
    %p28 = scmp.ne.s32.totalorder %s20, %s23
    %p29 = scmp.eq.s32.totalorder %s10, 0
    %p30 = por %p28, %p29
    %p31 = scmp.ne.s32.totalorder %s20, %s23
    %p32 = scmp.eq.s32.totalorder %s15, 1
    %p33 = por %p31, %p32
    %p34 = scmp.ne.s32.totalorder %s23, %s24
    %p35 = scmp.eq.s32.totalorder %s15, 0
    %p36 = por %p34, %p35
    %p37 = scmp.ne.s32.totalorder %s23, %s24
    %p38 = scmp.eq.s32.totalorder %s16, 1
    %p39 = por %p37, %p38
    %p41 = scmp.ne.s32.totalorder %s24, %s40
    %p42 = scmp.eq.s32.totalorder %s16, 0
    %p43 = por %p41, %p42
    %s45 = sadd.s32 %s44, 1
    %p48 = scmp.eq.s32.totalorder %s10, 1
    %p49 = scmp.ne.s32.totalorder %s44, %s46
    %p50 = scmp.eq.s32.totalorder %s10, 0
    %p51 = por %p49, %p50
    %p52 = scmp.ne.s32.totalorder %s44, %s46
    %p53 = scmp.eq.s32.totalorder %s15, 1
    %p54 = por %p52, %p53
    %p55 = scmp.ne.s32.totalorder %s46, %s47
    %p56 = scmp.eq.s32.totalorder %s15, 0
    %p57 = por %p55, %p56
    %p58 = scmp.ne.s32.totalorder %s46, %s47
    %p59 = scmp.eq.s32.totalorder %s16, 1
    %p60 = por %p58, %p59
    %p62 = scmp.ne.s32.totalorder %s47, %s61
    %p63 = scmp.eq.s32.totalorder %s16, 0
    %p64 = por %p62, %p63
    %s66 = sadd.s32 %s65, 1
    %p69 = scmp.eq.s32.totalorder %s10, 1
    %p70 = scmp.ne.s32.totalorder %s65, %s67
    %p71 = scmp.eq.s32.totalorder %s10, 0
    %p72 = por %p70, %p71
    %p73 = scmp.ne.s32.totalorder %s65, %s67
    %p74 = scmp.eq.s32.totalorder %s15, 1
    %p75 = por %p73, %p74
    %p76 = scmp.ne.s32.totalorder %s67, %s68
    %p77 = scmp.eq.s32.totalorder %s15, 0
    %p78 = por %p76, %p77
    %p79 = scmp.ne.s32.totalorder %s67, %s68
    %p80 = scmp.eq.s32.totalorder %s16, 1
    %p81 = por %p79, %p80
    %p83 = scmp.ne.s32.totalorder %s68, %s82
    %p84 = scmp.eq.s32.totalorder %s16, 0
    %p85 = por %p83, %p84
    %s87 = sadd.s32 %s86, 1
    %p90 = scmp.eq.s32.totalorder %s10, 1
    %p91 = scmp.ne.s32.totalorder %s86, %s88
    %p92 = scmp.eq.s32.totalorder %s10, 0
    %p93 = por %p91, %p92
    %p94 = scmp.ne.s32.totalorder %s86, %s88
    %p95 = scmp.eq.s32.totalorder %s15, 1
    %p96 = por %p94, %p95
    %p97 = scmp.ne.s32.totalorder %s88, %s89
    %p98 = scmp.eq.s32.totalorder %s15, 0
    %p99 = por %p97, %p98
    %p100 = scmp.ne.s32.totalorder %s88, %s89
    %p101 = scmp.eq.s32.totalorder %s16, 1
    %p102 = por %p100, %p101
    %p104 = scmp.ne.s32.totalorder %s89, %s103
    %p105 = scmp.eq.s32.totalorder %s16, 0
    %p106 = por %p104, %p105
    %s107 = ssub.s32 %s10, %s17
    %p108 = scmp.eq.s32.totalorder %s107, 0
    %s110 = sadd.s32 %s109, 1
    %s111 = scalar_select %p108, %s109, %s110
    %p114 = pneg %p108
    %p115 = scmp.eq.s32.totalorder %s10, 1
    %p116 = por %p114, %p115
    %p117 = scmp.ne.s32.totalorder %s109, %s112
    %p118 = scmp.eq.s32.totalorder %s10, 0
    %p119 = por %p117, %p118
    %p120 = scmp.ne.s32.totalorder %s109, %s112
    %p121 = scmp.eq.s32.totalorder %s15, 1
    %p122 = por %p120, %p121
    %p123 = scmp.ne.s32.totalorder %s112, %s113
    %p124 = scmp.eq.s32.totalorder %s15, 0
    %p125 = por %p123, %p124
    %p126 = scmp.ne.s32.totalorder %s112, %s113
    %p127 = scmp.eq.s32.totalorder %s16, 1
    %p128 = por %p126, %p127
    %p130 = scmp.ne.s32.totalorder %s113, %s129
    %p131 = scmp.eq.s32.totalorder %s16, 0
    %p132 = por %p130, %p131
    %p133 = scmp.le.s32.totalorder 1, %s10
    %p134 = scmp.lt.s32.totalorder %s10, 3
    %p135 = pnand %p133, %p134
    %p136 = pneg %p135
    // Predicated region
    $region9: #{ae_decoder2d.5} parent=5 // pred_check
      _
    $region10: #{ae_decoder2d.5} parent=5 // pred_check_branch
      %138 = sbr.rel (%p135) target = $region12
    $region11: #{ae_decoder2d.5} parent=5 // pred_region
      %s139 = ssub.s32 %s10, 1
      // Predicated region
      $region13: #{ae_decoder2d.5} parent=11 // pred_check
        %p140 = pneg %p57
      $region14: #{ae_decoder2d.5} parent=11 // pred_check_branch
        %142 = sbr.rel (%p140) target = $region16
      $region15: #{ae_decoder2d.5} parent=11 // pred_region
        _
      $region16: #{ae_decoder2d.5} parent=11 // pred_fallthru
        _
      // Predicated region
      $region17: #{ae_decoder2d.5} parent=11 // pred_check
        %p143 = pneg %p78
      $region18: #{ae_decoder2d.5} parent=11 // pred_check_branch
        %145 = sbr.rel (%p143) target = $region20
      $region19: #{ae_decoder2d.5} parent=11 // pred_region
        _
      $region20: #{ae_decoder2d.5} parent=11 // pred_fallthru
        _
      // Predicated region
      $region21: #{ae_decoder2d.5} parent=11 // pred_check
        %p146 = pneg %p99
      $region22: #{ae_decoder2d.5} parent=11 // pred_check_branch
        %148 = sbr.rel (%p146) target = $region24
      $region23: #{ae_decoder2d.5} parent=11 // pred_region
        _
      $region24: #{ae_decoder2d.5} parent=11 // pred_fallthru
        _
    $region12: #{ae_decoder2d.5} parent=5 // pred_fallthru
      _
    %p149 = scmp.lt.s32.totalorder %s10, 2
    // Predicated region
    $region25: #{ae_decoder2d.5} parent=5 // pred_check
      %p150 = pneg %p149
    $region26: #{ae_decoder2d.5} parent=5 // pred_check_branch
      %152 = sbr.rel (%p150) target = $region28
    $region27: #{ae_decoder2d.5} parent=5 // pred_region
      // Predicated region
      $region29: #{ae_decoder2d.5} parent=27 // pred_check
        %p153 = pneg %p30
      $region30: #{ae_decoder2d.5} parent=27 // pred_check_branch
        %155 = sbr.rel (%p153) target = $region32
      $region31: #{ae_decoder2d.5} parent=27 // pred_region
        %p156 = scmp.lt.s32.totalorder %s10, 1
        %s157 = scalar_select %p156, %s10, 1
        %s158 = smul.addr %s157, 4
        %s159 = smul.addr %s158, 4
        %s160 = scalar_lea.vmem %s0, %s159
      $region32: #{ae_decoder2d.5} parent=27 // pred_fallthru
        _
    $region28: #{ae_decoder2d.5} parent=5 // pred_fallthru
      _
    %p161 = scmp.le.s32.totalorder 1, %s10
    %p162 = scmp.lt.s32.totalorder %s10, 3
    %p163 = pnand %p161, %p162
    %p164 = pneg %p163
    // Predicated region
    $region33: #{ae_decoder2d.5} parent=5 // pred_check
      _
    $region34: #{ae_decoder2d.5} parent=5 // pred_check_branch
      %166 = sbr.rel (%p163) target = $region36
    $region35: #{ae_decoder2d.5} parent=5 // pred_region
      %s167 = ssub.s32 %s10, 1
      %p168 = scmp.lt.s32.totalorder %s15, 1
      %s169 = scalar_select %p168, %s15, 1
      %s170 = smul.addr %s169, 4
      %s171 = smul.addr %s170, 4
      %s172 = scalar_lea.vmem %s0, %s171
      %p173 = pneg %p36
      %p174 = pneg %p33
      %p175 = pneg %p57
      %p176 = pneg %p54
      %p177 = pneg %p78
      %p178 = pneg %p75
      %p179 = pneg %p99
      %p180 = pneg %p96
      %p181 = pneg %p125
      %p182 = pneg %p122
      %p183 = scmp.lt.s32.totalorder %s15, 1
      %s184 = scalar_select %p183, %s15, 1
      %s185 = smul.addr %s184, 4
      %s186 = smul.addr %s185, 4
      %s187 = scalar_lea.vmem %s4, %s186
      %p188 = scmp.lt.s32.totalorder %s15, 1
      %s189 = scalar_select %p188, %s15, 1
      %s190 = smul.addr %s189, 4
      %s191 = smul.addr %s190, 4
      %s192 = scalar_lea.vmem %s0, %s191
      %p193 = scmp.lt.s32.totalorder %s15, 1
      %s194 = scalar_select %p193, %s15, 1
      %s195 = smul.addr %s194, 4
      %s196 = smul.addr %s195, 4
      %s197 = scalar_lea.vmem %s4, %s196
      %v198 = vld [vmem:[%s192] sm:$0xff]
      %v199 = vld [vmem:[%s192 + $0x8] sm:$0xff]
      %v200 = vunpack.c.l.bf16 %v198
      %v201 = vunpack.c.h.bf16 %v198
      %v202 = vunpack.c.l.bf16 %v199
      %v203 = vunpack.c.h.bf16 %v199
      %208 = vrot.lane.b32.xlu0 %v200, 127
      %v209 = vpop.permute.xlu0 %208
      %210 = vrot.lane.b32.xlu0 %v201, 127
      %v211 = vpop.permute.xlu0 %210
      %212 = vrot.lane.b32.xlu0 %v202, 127
      %v213 = vpop.permute.xlu0 %212
      %214 = vrot.lane.b32.xlu0 %v203, 127
      %v215 = vpop.permute.xlu0 %214
      %vm216 = vcmask 1039360
      %v217 = vsel %vm216, %v209, %v211
      %v218 = vsel %vm216, %v213, %v215
      %221 = vrot.lane.b32.xlu0 %v200, 126
      %v222 = vpop.permute.xlu0 %221
      %223 = vrot.lane.b32.xlu0 %v201, 126
      %v224 = vpop.permute.xlu0 %223
      %225 = vrot.lane.b32.xlu0 %v202, 126
      %v226 = vpop.permute.xlu0 %225
      %227 = vrot.lane.b32.xlu0 %v203, 126
      %v228 = vpop.permute.xlu0 %227
      %vm229 = vcmask 1031168
      %v230 = vsel %vm229, %v222, %v224
      %v231 = vsel %vm229, %v226, %v228
      %234 = vrot.lane.b32.xlu0 %v200, 118
      %v235 = vpop.permute.xlu0 %234
      %236 = vrot.lane.b32.xlu0 %v201, 118
      %v237 = vpop.permute.xlu0 %236
      %238 = vrot.lane.b32.xlu0 %v202, 118
      %v239 = vpop.permute.xlu0 %238
      %240 = vrot.lane.b32.xlu0 %v203, 118
      %v241 = vpop.permute.xlu0 %240
      %vm242 = vcmask 965632
      %v243 = vsel %vm242, %v235, %v237
      %v244 = vsel %vm242, %v239, %v241
      %247 = vrot.lane.b32.xlu0 %v200, 117
      %v248 = vpop.permute.xlu0 %247
      %249 = vrot.lane.b32.xlu0 %v201, 117
      %v250 = vpop.permute.xlu0 %249
      %251 = vrot.lane.b32.xlu0 %v202, 117
      %v252 = vpop.permute.xlu0 %251
      %253 = vrot.lane.b32.xlu0 %v203, 117
      %v254 = vpop.permute.xlu0 %253
      %vm255 = vcmask 957440
      %v256 = vsel %vm255, %v248, %v250
      %v257 = vsel %vm255, %v252, %v254
      %260 = vrot.lane.b32.xlu0 %v200, 116
      %v261 = vpop.permute.xlu0 %260
      %262 = vrot.lane.b32.xlu0 %v201, 116
      %v263 = vpop.permute.xlu0 %262
      %264 = vrot.lane.b32.xlu0 %v202, 116
      %v265 = vpop.permute.xlu0 %264
      %266 = vrot.lane.b32.xlu0 %v203, 116
      %v267 = vpop.permute.xlu0 %266
      %vm268 = vcmask 949248
      %v269 = vsel %vm268, %v261, %v263
      %v270 = vsel %vm268, %v265, %v267
      %273 = vrot.lane.b32.xlu0 %v200, 108
      %v274 = vpop.permute.xlu0 %273
      %275 = vrot.lane.b32.xlu0 %v201, 108
      %v276 = vpop.permute.xlu0 %275
      %277 = vrot.lane.b32.xlu0 %v202, 108
      %v278 = vpop.permute.xlu0 %277
      %279 = vrot.lane.b32.xlu0 %v203, 108
      %v280 = vpop.permute.xlu0 %279
      %vm281 = vcmask 883712
      %v282 = vsel %vm281, %v274, %v276
      %v283 = vsel %vm281, %v278, %v280
      %286 = vrot.lane.b32.xlu0 %v200, 107
      %v287 = vpop.permute.xlu0 %286
      %288 = vrot.lane.b32.xlu0 %v201, 107
      %v289 = vpop.permute.xlu0 %288
      %290 = vrot.lane.b32.xlu0 %v202, 107
      %v291 = vpop.permute.xlu0 %290
      %292 = vrot.lane.b32.xlu0 %v203, 107
      %v293 = vpop.permute.xlu0 %292
      %vm294 = vcmask 875520
      %v295 = vsel %vm294, %v287, %v289
      %v296 = vsel %vm294, %v291, %v293
      %299 = vrot.lane.b32.xlu0 %v200, 106
      %v300 = vpop.permute.xlu0 %299
      %301 = vrot.lane.b32.xlu0 %v201, 106
      %v302 = vpop.permute.xlu0 %301
      %303 = vrot.lane.b32.xlu0 %v202, 106
      %v304 = vpop.permute.xlu0 %303
      %305 = vrot.lane.b32.xlu0 %v203, 106
      %v306 = vpop.permute.xlu0 %305
      %vm307 = vcmask 867328
      %v308 = vsel %vm307, %v300, %v302
      %v309 = vsel %vm307, %v304, %v306
      %v312 = vld [vmem:[%s1] sm:$0xff]
      %v313 = vld [vmem:[%s1 + $0x8] sm:$0xff]
      %v314 = vld [vmem:[%s1 + $0x10] sm:$0xff]
      %v315 = vld [vmem:[%s1 + $0x18] sm:$0xff]
      %v316 = vld [vmem:[%s1 + $0x20] sm:$0xff]
      %v317 = vld [vmem:[%s1 + $0x28] sm:$0xff]
      %v318 = vld [vmem:[%s1 + $0x30] sm:$0xff]
      %v319 = vld [vmem:[%s1 + $0x38] sm:$0xff]
      %vm320 = vcmask 130048
      %v322 = vsel %vm320, %v313, 0
      %v325 = vsel %vm320, %v315, 0
      %v328 = vsel %vm320, %v317, 0
      %v331 = vsel %vm320, %v319, 0
      %333 = vmatprep.subr.mxu0 0.0
      %334 = vmatpush1.msra.mxu0 %v200
      %335 = vmatprep.subr.mxu0 0.0
      %336 = vmatpush1.msra.mxu0 %v202
      %337 = vmatprep.subr.mxu0 0.0
      %338 = vmatpush1.msra.mxu0 %v217
      %339 = vmatprep.subr.mxu0 0.0
      %340 = vmatpush1.msra.mxu0 %v218
      %341 = vmatprep.subr.mxu0 0.0
      %342 = vmatpush1.msra.mxu0 %v230
      %343 = vmatprep.subr.mxu0 0.0
      %344 = vmatpush1.msra.mxu0 %v231
      %345 = vmatprep.subr.mxu0 0.0
      %346 = vmatpush1.msra.mxu0 %v243
      %347 = vmatprep.subr.mxu0 0.0
      %348 = vmatpush1.msra.mxu0 %v244
      %349 = vmatprep.subr.mxu0 0.0
      %350 = vmatpush1.msra.mxu0 %v256
      %351 = vmatprep.subr.mxu0 0.0
      %352 = vmatpush1.msra.mxu0 %v257
      %353 = vmatprep.subr.mxu0 0.0
      %354 = vmatpush1.msra.mxu0 %v269
      %355 = vmatprep.subr.mxu0 0.0
      %356 = vmatpush1.msra.mxu0 %v270
      %357 = vmatprep.subr.mxu0 0.0
      %358 = vmatpush1.msra.mxu0 %v282
      %359 = vmatprep.subr.mxu0 0.0
      %360 = vmatpush1.msra.mxu0 %v283
      %361 = vmatprep.subr.mxu0 0.0
      %362 = vmatpush1.msra.mxu0 %v295
      %363 = vmatprep.subr.mxu0 0.0
      %364 = vmatpush1.msra.mxu0 %v296
      %365 = vmatprep.subr.mxu0 0.0
      %366 = vmatpush1.msra.mxu0 %v308
      %367 = vmatprep.subr.mxu0 0.0
      %368 = vmatpush1.msra.mxu0 %v309
      %369 = vmatprep.subr.mxu0 0.0
      %370 = vmatpush1.msra.mxu0 0.0
      %371 = vmatprep.subr.mxu0 0.0
      %372 = vmatpush1.msra.mxu0 0.0
      %373 = vmatprep.subr.mxu0 0.0
      %374 = vmatpush1.msra.mxu0 0.0
      %375 = vmatprep.subr.mxu0 0.0
      %376 = vmatpush1.msra.mxu0 0.0
      %377 = vmatprep.subr.mxu0 0.0
      %378 = vmatpush1.msra.mxu0 0.0
      %379 = vmatprep.subr.mxu0 0.0
      %380 = vmatpush1.msra.mxu0 0.0
      %381 = vmatprep.subr.mxu0 0.0
      %382 = vmatpush1.msra.mxu0 0.0
      %383 = vmatprep.subr.mxu0 0.0
      %384 = vmatpush1.msra.mxu0 0.0
      %385 = vmatprep.subr.mxu0 0.0
      %386 = vmatpush1.msra.mxu0 0.0
      %387 = vmatprep.subr.mxu0 0.0
      %388 = vmatpush1.msra.mxu0 0.0
      %389 = vmatprep.subr.mxu0 0.0
      %390 = vmatpush1.msra.mxu0 0.0
      %391 = vmatprep.subr.mxu0 0.0
      %392 = vmatpush1.msra.mxu0 0.0
      %393 = vmatprep.subr.mxu0 0.0
      %394 = vmatpush1.msra.mxu0 0.0
      %395 = vmatprep.subr.mxu0 0.0
      %396 = vmatpush1.msra.mxu0 0.0
      %397 = vmatprep.mubr.f32.mxu0 %v322
      %398 = vmatmul.mubr.f32.gmra.mrb[0].mxu0 %v312
      %v399 = vpop.f32.mrb[0].mxu0
      %v400 = vadd.f32 0.0, %v399
      %v401 = vpop.f32.mrb[0].mxu0
      %402 = vmatprep.mubr.f32.mxu0 %v325
      %403 = vmatmul.mubr.f32.gmra.mrb[0].mxu0 %v314
      %v404 = vpop.f32.mrb[0].mxu0
      %v405 = vadd.f32 0.0, %v404
      %v406 = vpop.f32.mrb[0].mxu0
      %407 = vmatprep.mubr.f32.mxu0 %v328
      %408 = vmatmul.mubr.f32.gmra.mrb[0].mxu0 %v316
      %v409 = vpop.f32.mrb[0].mxu0
      %v410 = vadd.f32 0.0, %v409
      %v411 = vpop.f32.mrb[0].mxu0
      %412 = vmatprep.mubr.f32.mxu0 %v331
      %413 = vmatmul.mubr.f32.gmra.mrb[0].mxu0 %v318
      %v414 = vpop.f32.mrb[0].mxu0
      %v415 = vadd.f32 0.0, %v414
      %v416 = vpop.f32.mrb[0].mxu0
      %417 = vdwg.mxu0
      %v418 = vld [vmem:[%s2] sm:$0xff]
      %v419 = vld [vmem:[%s2 + $0x8] sm:$0xff]
      %v420 = vld [vmem:[%s2 + $0x10] sm:$0xff]
      %v421 = vld [vmem:[%s2 + $0x18] sm:$0xff]
      %423 = vset.pattern.permute.xlu0 0
      %424 = vperm.xlu0 %423, %v418
      %v425 = vpop.permute.xlu0 %424
      %428 = vset.pattern.permute.xlu0 0
      %429 = vperm.xlu0 %428, %v419
      %v430 = vpop.permute.xlu0 %429
      %433 = vset.pattern.permute.xlu0 0
      %434 = vperm.xlu0 %433, %v420
      %v435 = vpop.permute.xlu0 %434
      %438 = vset.pattern.permute.xlu0 0
      %439 = vperm.xlu0 %438, %v421
      %v440 = vpop.permute.xlu0 %439
      %v442 = vmul.f32 %v400, %v425
      %v443 = vmul.f32 %v405, %v430
      %v444 = vmul.f32 %v410, %v435
      %v445 = vmul.f32 %v415, %v440
      %v446 = vld [vmem:[%s3] sm:$0xff]
      %v447 = vld [vmem:[%s3 + $0x8] sm:$0xff]
      %v448 = vld [vmem:[%s3 + $0x10] sm:$0xff]
      %v449 = vld [vmem:[%s3 + $0x18] sm:$0xff]
      %451 = vset.pattern.permute.xlu0 0
      %452 = vperm.xlu0 %451, %v446
      %v453 = vpop.permute.xlu0 %452
      %456 = vset.pattern.permute.xlu0 0
      %457 = vperm.xlu0 %456, %v447
      %v458 = vpop.permute.xlu0 %457
      %461 = vset.pattern.permute.xlu0 0
      %462 = vperm.xlu0 %461, %v448
      %v463 = vpop.permute.xlu0 %462
      %466 = vset.pattern.permute.xlu0 0
      %467 = vperm.xlu0 %466, %v449
      %v468 = vpop.permute.xlu0 %467
      %v470 = vadd.f32 %v442, %v453
      %v471 = vadd.f32 %v443, %v458
      %v472 = vadd.f32 %v444, %v463
      %v473 = vadd.f32 %v445, %v468
      %v474 = vmax.f32 %v470, 0.0
      %v475 = vmax.f32 %v471, 0.0
      %v476 = vmax.f32 %v472, 0.0
      %v477 = vmax.f32 %v473, 0.0
      %v478 = vpack.c.bf16 %v475, %v474
      %v479 = vpack.c.bf16 %v477, %v476
      %v482 = vunpack.c.l.b16 %v478
      %v483 = vunpack.c.h.b16 %v478
      %v484 = vunpack.c.l.b16 %v479
      %v485 = vunpack.c.h.b16 %v479
      %v486 = vpack.c.b16 %v482, %v482
      %v487 = vpack.c.b16 %v483, %v483
      %v488 = vpack.c.b16 %v484, %v484
      %v489 = vpack.c.b16 %v485, %v485
      %494 = vst [vmem:[%s197] sm:$0xf] %v486
      %495 = vst [vmem:[%s197 + $0x4] sm:$0xf] %v487
      %496 = vst [vmem:[%s197 + $0x8] sm:$0xf] %v488
      %497 = vst [vmem:[%s197 + $0xc] sm:$0xf] %v489
      %p498 = scmp.lt.s32.totalorder %s15, 1
      %s499 = scalar_select %p498, %s15, 1
      %s500 = smul.addr %s499, 4
      %s501 = smul.addr %s500, 4
      %s502 = scalar_lea.vmem %s4, %s501
      // Predicated region
      $region37: #{ae_decoder2d.5} parent=35 // pred_check
        %p503 = pneg %p122
      $region38: #{ae_decoder2d.5} parent=35 // pred_check_branch
        %505 = sbr.rel (%p503) target = $region40
      $region39: #{ae_decoder2d.5} parent=35 // pred_region
        _
      $region40: #{ae_decoder2d.5} parent=35 // pred_fallthru
        _
    $region36: #{ae_decoder2d.5} parent=5 // pred_fallthru
      _
    %p506 = scmp.le.s32.totalorder 2, %s10
    // Predicated region
    $region41: #{ae_decoder2d.5} parent=5 // pred_check
      %p507 = pneg %p506
    $region42: #{ae_decoder2d.5} parent=5 // pred_check_branch
      %509 = sbr.rel (%p507) target = $region44
    $region43: #{ae_decoder2d.5} parent=5 // pred_region
      %s510 = ssub.s32 %s10, 2
      // Predicated region
      $region45: #{ae_decoder2d.5} parent=43 // pred_check
        %p511 = pneg %p128
      $region46: #{ae_decoder2d.5} parent=43 // pred_check_branch
        %513 = sbr.rel (%p511) target = $region48
      $region47: #{ae_decoder2d.5} parent=43 // pred_region
        %p514 = scmp.lt.s32.totalorder %s16, 1
        %s515 = scalar_select %p514, %s16, 1
        %s516 = smul.addr %s515, 4
        %s517 = smul.addr %s516, 4
        %s518 = scalar_lea.vmem %s4, %s517
      $region48: #{ae_decoder2d.5} parent=43 // pred_fallthru
        _
    $region44: #{ae_decoder2d.5} parent=5 // pred_fallthru
      _
  $region6: #{ae_decoder2d.5} parent=0 // loop_footer
    %s14 = sadd.s32 1, %s10
  $region7: #{ae_decoder2d.5} parent=0 // loop_footer_branch
    %9 = sbr.rel target = $region3
  $region8: #{ae_decoder2d.5} parent=0 // loop_exit
    _

// kernel: ae_decoder2d.4
$region0: #{ae_decoder2d.4}
  #allocation0 [shape = 'u32[]', space=smem, size = 0x4, offset = 0x4, fixed_abs, tag = 'smem constant byte address 0x4 - core index']
  #allocation1 [shape = 'u32[144,128]{1,0:T(1,128)}', space=vmem, size = 0x12000, scoped, tag = 'internal scratch']
  %s0 = inlined_call_operand.vmem [shape: bf16[2,16,256], index: 0, kind: input, shape index: {}]
  %s1 = inlined_call_operand.vmem [shape: f32[32,144], index: 1, kind: input, shape index: {}]
  %s2 = inlined_call_operand.vmem [shape: f32[1,128], index: 2, kind: input, shape index: {}]
  %s3 = inlined_call_operand.vmem [shape: f32[2,32,1], index: 3, kind: output, shape index: {0}]
  %s4 = inlined_call_operand.vmem [shape: f32[2,32,1], index: 4, kind: output, shape index: {1}]
  %5 = xla_tuple %s3, %s4
  %s6 = sld [smem:[#allocation0]]
  $region53: #{ae_decoder2d.4} parent=0
    _
  %s8 = ssub.s32 1, %s6
  %s9 = scalar_select 0, %s8, %s6
  loop: start=0, step=1, limit=4
  $region2: #{ae_decoder2d.4} parent=0 // loop_pre_header
    _
  $region3: #{ae_decoder2d.4} parent=0 // loop_header
    %s11 = sphi 0, %s15
    %p12 = scmp.ge.s32.totalorder %s11, 4
    %s21 = sphi 0, %s23
    %s24 = sphi 0, %s21
    %s25 = sphi 0, %s24
    %s41 = sphi 0, %s25
    %s45 = sphi 0, %s45
    %s47 = sphi 0, %s45
    %s48 = sphi 0, %s47
    %s62 = sphi 0, %s48
    %s66 = sphi 0, %s66
    %s68 = sphi 0, %s66
    %s69 = sphi 0, %s68
    %s83 = sphi 0, %s69
    %s89 = sphi 0, %s91
    %s92 = sphi 0, %s89
    %s93 = sphi 0, %s92
    %s109 = sphi 0, %s93
    %s115 = sphi 0, %s117
    %s118 = sphi 0, %s115
    %s119 = sphi 0, %s118
    %s135 = sphi 0, %s119
  $region4: #{ae_decoder2d.4} parent=0 // loop_header_branch
    %14 = sbr.rel (%p12) target = $region8
  $region5: #{ae_decoder2d.4} parent=0 // loop_body
    %s16 = ssub.s32 %s11, 1
    %s17 = ssub.s32 %s11, 2
    %s18 = sadd.s32 %s11, 1
    %s19 = ssub.s32 %s11, %s18
    %p20 = scmp.eq.s32.totalorder %s19, 0
    %s22 = sadd.s32 %s21, 1
    %s23 = scalar_select %p20, %s21, %s22
    %p26 = pneg %p20
    %p27 = scmp.eq.s32.totalorder %s11, 1
    %p28 = por %p26, %p27
    %p29 = scmp.ne.s32.totalorder %s21, %s24
    %p30 = scmp.eq.s32.totalorder %s11, 0
    %p31 = por %p29, %p30
    %p32 = scmp.ne.s32.totalorder %s21, %s24
    %p33 = scmp.eq.s32.totalorder %s16, 1
    %p34 = por %p32, %p33
    %p35 = scmp.ne.s32.totalorder %s24, %s25
    %p36 = scmp.eq.s32.totalorder %s16, 0
    %p37 = por %p35, %p36
    %p38 = scmp.ne.s32.totalorder %s24, %s25
    %p39 = scmp.eq.s32.totalorder %s17, 1
    %p40 = por %p38, %p39
    %p42 = scmp.ne.s32.totalorder %s25, %s41
    %p43 = scmp.eq.s32.totalorder %s17, 0
    %p44 = por %p42, %p43
    %s46 = sadd.s32 %s45, 1
    %p49 = scmp.eq.s32.totalorder %s11, 1
    %p50 = scmp.ne.s32.totalorder %s45, %s47
    %p51 = scmp.eq.s32.totalorder %s11, 0
    %p52 = por %p50, %p51
    %p53 = scmp.ne.s32.totalorder %s45, %s47
    %p54 = scmp.eq.s32.totalorder %s16, 1
    %p55 = por %p53, %p54
    %p56 = scmp.ne.s32.totalorder %s47, %s48
    %p57 = scmp.eq.s32.totalorder %s16, 0
    %p58 = por %p56, %p57
    %p59 = scmp.ne.s32.totalorder %s47, %s48
    %p60 = scmp.eq.s32.totalorder %s17, 1
    %p61 = por %p59, %p60
    %p63 = scmp.ne.s32.totalorder %s48, %s62
    %p64 = scmp.eq.s32.totalorder %s17, 0
    %p65 = por %p63, %p64
    %s67 = sadd.s32 %s66, 1
    %p70 = scmp.eq.s32.totalorder %s11, 1
    %p71 = scmp.ne.s32.totalorder %s66, %s68
    %p72 = scmp.eq.s32.totalorder %s11, 0
    %p73 = por %p71, %p72
    %p74 = scmp.ne.s32.totalorder %s66, %s68
    %p75 = scmp.eq.s32.totalorder %s16, 1
    %p76 = por %p74, %p75
    %p77 = scmp.ne.s32.totalorder %s68, %s69
    %p78 = scmp.eq.s32.totalorder %s16, 0
    %p79 = por %p77, %p78
    %p80 = scmp.ne.s32.totalorder %s68, %s69
    %p81 = scmp.eq.s32.totalorder %s17, 1
    %p82 = por %p80, %p81
    %p84 = scmp.ne.s32.totalorder %s69, %s83
    %p85 = scmp.eq.s32.totalorder %s17, 0
    %p86 = por %p84, %p85
    %s87 = ssub.s32 %s11, %s18
    %p88 = scmp.eq.s32.totalorder %s87, 0
    %s90 = sadd.s32 %s89, 1
    %s91 = scalar_select %p88, %s89, %s90
    %p94 = pneg %p88
    %p95 = scmp.eq.s32.totalorder %s11, 1
    %p96 = por %p94, %p95
    %p97 = scmp.ne.s32.totalorder %s89, %s92
    %p98 = scmp.eq.s32.totalorder %s11, 0
    %p99 = por %p97, %p98
    %p100 = scmp.ne.s32.totalorder %s89, %s92
    %p101 = scmp.eq.s32.totalorder %s16, 1
    %p102 = por %p100, %p101
    %p103 = scmp.ne.s32.totalorder %s92, %s93
    %p104 = scmp.eq.s32.totalorder %s16, 0
    %p105 = por %p103, %p104
    %p106 = scmp.ne.s32.totalorder %s92, %s93
    %p107 = scmp.eq.s32.totalorder %s17, 1
    %p108 = por %p106, %p107
    %p110 = scmp.ne.s32.totalorder %s93, %s109
    %p111 = scmp.eq.s32.totalorder %s17, 0
    %p112 = por %p110, %p111
    %s113 = ssub.s32 %s11, %s18
    %p114 = scmp.eq.s32.totalorder %s113, 0
    %s116 = sadd.s32 %s115, 1
    %s117 = scalar_select %p114, %s115, %s116
    %p120 = pneg %p114
    %p121 = scmp.eq.s32.totalorder %s11, 1
    %p122 = por %p120, %p121
    %p123 = scmp.ne.s32.totalorder %s115, %s118
    %p124 = scmp.eq.s32.totalorder %s11, 0
    %p125 = por %p123, %p124
    %p126 = scmp.ne.s32.totalorder %s115, %s118
    %p127 = scmp.eq.s32.totalorder %s16, 1
    %p128 = por %p126, %p127
    %p129 = scmp.ne.s32.totalorder %s118, %s119
    %p130 = scmp.eq.s32.totalorder %s16, 0
    %p131 = por %p129, %p130
    %p132 = scmp.ne.s32.totalorder %s118, %s119
    %p133 = scmp.eq.s32.totalorder %s17, 1
    %p134 = por %p132, %p133
    %p136 = scmp.ne.s32.totalorder %s119, %s135
    %p137 = scmp.eq.s32.totalorder %s17, 0
    %p138 = por %p136, %p137
    %p139 = scmp.le.s32.totalorder 1, %s11
    %p140 = scmp.lt.s32.totalorder %s11, 3
    %p141 = pnand %p139, %p140
    %p142 = pneg %p141
    // Predicated region
    $region9: #{ae_decoder2d.4} parent=5 // pred_check
      _
    $region10: #{ae_decoder2d.4} parent=5 // pred_check_branch
      %144 = sbr.rel (%p141) target = $region12
    $region11: #{ae_decoder2d.4} parent=5 // pred_region
      %s145 = ssub.s32 %s11, 1
      // Predicated region
      $region13: #{ae_decoder2d.4} parent=11 // pred_check
        %p146 = pneg %p58
      $region14: #{ae_decoder2d.4} parent=11 // pred_check_branch
        %148 = sbr.rel (%p146) target = $region16
      $region15: #{ae_decoder2d.4} parent=11 // pred_region
        _
      $region16: #{ae_decoder2d.4} parent=11 // pred_fallthru
        _
      // Predicated region
      $region17: #{ae_decoder2d.4} parent=11 // pred_check
        %p149 = pneg %p79
      $region18: #{ae_decoder2d.4} parent=11 // pred_check_branch
        %151 = sbr.rel (%p149) target = $region20
      $region19: #{ae_decoder2d.4} parent=11 // pred_region
        _
      $region20: #{ae_decoder2d.4} parent=11 // pred_fallthru
        _
    $region12: #{ae_decoder2d.4} parent=5 // pred_fallthru
      _
    %p152 = scmp.lt.s32.totalorder %s11, 2
    // Predicated region
    $region21: #{ae_decoder2d.4} parent=5 // pred_check
      %p153 = pneg %p152
    $region22: #{ae_decoder2d.4} parent=5 // pred_check_branch
      %155 = sbr.rel (%p153) target = $region24
    $region23: #{ae_decoder2d.4} parent=5 // pred_region
      // Predicated region
      $region25: #{ae_decoder2d.4} parent=23 // pred_check
        %p156 = pneg %p31
      $region26: #{ae_decoder2d.4} parent=23 // pred_check_branch
        %158 = sbr.rel (%p156) target = $region28
      $region27: #{ae_decoder2d.4} parent=23 // pred_region
        %p159 = scmp.lt.s32.totalorder %s11, 1
        %s160 = scalar_select %p159, %s11, 1
        %s161 = smul.addr %s160, 4
        %s162 = smul.addr %s161, 4
        %s163 = scalar_lea.vmem %s0, %s162
      $region28: #{ae_decoder2d.4} parent=23 // pred_fallthru
        _
    $region24: #{ae_decoder2d.4} parent=5 // pred_fallthru
      _
    %p164 = scmp.le.s32.totalorder 1, %s11
    %p165 = scmp.lt.s32.totalorder %s11, 3
    %p166 = pnand %p164, %p165
    %p167 = pneg %p166
    // Predicated region
    $region29: #{ae_decoder2d.4} parent=5 // pred_check
      _
    $region30: #{ae_decoder2d.4} parent=5 // pred_check_branch
      %169 = sbr.rel (%p166) target = $region32
    $region31: #{ae_decoder2d.4} parent=5 // pred_region
      %s170 = ssub.s32 %s11, 1
      %p171 = scmp.lt.s32.totalorder %s16, 1
      %s172 = scalar_select %p171, %s16, 1
      %s173 = smul.addr %s172, 4
      %s174 = smul.addr %s173, 4
      %s175 = scalar_lea.vmem %s0, %s174
      %p176 = pneg %p37
      %p177 = pneg %p34
      %p178 = pneg %p58
      %p179 = pneg %p55
      %p180 = pneg %p79
      %p181 = pneg %p76
      %p182 = pneg %p105
      %p183 = pneg %p102
      %p184 = scmp.lt.s32.totalorder %s16, 1
      %s185 = scalar_select %p184, %s16, 1
      %s186 = smul.addr %s185, 4
      %s187 = smul.addr %s186, 8
      %s188 = scalar_lea.vmem %s3, %s187
      %p189 = pneg %p131
      %p190 = pneg %p128
      %p191 = scmp.lt.s32.totalorder %s16, 1
      %s192 = scalar_select %p191, %s16, 1
      %s193 = smul.addr %s192, 4
      %s194 = smul.addr %s193, 8
      %s195 = scalar_lea.vmem %s4, %s194
      %p196 = scmp.lt.s32.totalorder %s16, 1
      %s197 = scalar_select %p196, %s16, 1
      %s198 = smul.addr %s197, 4
      %s199 = smul.addr %s198, 4
      %s200 = scalar_lea.vmem %s0, %s199
      %p201 = scmp.lt.s32.totalorder %s16, 1
      %s202 = scalar_select %p201, %s16, 1
      %s203 = smul.addr %s202, 4
      %s204 = smul.addr %s203, 8
      %s205 = scalar_lea.vmem %s3, %s204
      %p206 = scmp.lt.s32.totalorder %s16, 1
      %s207 = scalar_select %p206, %s16, 1
      %s208 = smul.addr %s207, 4
      %s209 = smul.addr %s208, 8
      %s210 = scalar_lea.vmem %s4, %s209
      %v211 = vld [vmem:[%s200] sm:$0xff]
      %v212 = vld [vmem:[%s200 + $0x8] sm:$0xff]
      %v213 = vunpack.c.l.bf16 %v211
      %v214 = vunpack.c.h.bf16 %v211
      %v215 = vunpack.c.l.bf16 %v212
      %v216 = vunpack.c.h.bf16 %v212
      %221 = vrot.lane.b32.xlu0 %v213, 127
      %v222 = vpop.permute.xlu0 %221
      %223 = vrot.lane.b32.xlu0 %v214, 127
      %v224 = vpop.permute.xlu0 %223
      %225 = vrot.lane.b32.xlu0 %v215, 127
      %v226 = vpop.permute.xlu0 %225
      %227 = vrot.lane.b32.xlu0 %v216, 127
      %v228 = vpop.permute.xlu0 %227
      %vm229 = vcmask 1039360
      %v230 = vsel %vm229, %v222, %v224
      %v231 = vsel %vm229, %v226, %v228
      %234 = vrot.lane.b32.xlu0 %v213, 126
      %v235 = vpop.permute.xlu0 %234
      %236 = vrot.lane.b32.xlu0 %v214, 126
      %v237 = vpop.permute.xlu0 %236
      %238 = vrot.lane.b32.xlu0 %v215, 126
      %v239 = vpop.permute.xlu0 %238
      %240 = vrot.lane.b32.xlu0 %v216, 126
      %v241 = vpop.permute.xlu0 %240
      %vm242 = vcmask 1031168
      %v243 = vsel %vm242, %v235, %v237
      %v244 = vsel %vm242, %v239, %v241
      %247 = vrot.lane.b32.xlu0 %v213, 118
      %v248 = vpop.permute.xlu0 %247
      %249 = vrot.lane.b32.xlu0 %v214, 118
      %v250 = vpop.permute.xlu0 %249
      %251 = vrot.lane.b32.xlu0 %v215, 118
      %v252 = vpop.permute.xlu0 %251
      %253 = vrot.lane.b32.xlu0 %v216, 118
      %v254 = vpop.permute.xlu0 %253
      %vm255 = vcmask 965632
      %v256 = vsel %vm255, %v248, %v250
      %v257 = vsel %vm255, %v252, %v254
      %260 = vrot.lane.b32.xlu0 %v213, 117
      %v261 = vpop.permute.xlu0 %260
      %262 = vrot.lane.b32.xlu0 %v214, 117
      %v263 = vpop.permute.xlu0 %262
      %264 = vrot.lane.b32.xlu0 %v215, 117
      %v265 = vpop.permute.xlu0 %264
      %266 = vrot.lane.b32.xlu0 %v216, 117
      %v267 = vpop.permute.xlu0 %266
      %vm268 = vcmask 957440
      %v269 = vsel %vm268, %v261, %v263
      %v270 = vsel %vm268, %v265, %v267
      %273 = vrot.lane.b32.xlu0 %v213, 116
      %v274 = vpop.permute.xlu0 %273
      %275 = vrot.lane.b32.xlu0 %v214, 116
      %v276 = vpop.permute.xlu0 %275
      %277 = vrot.lane.b32.xlu0 %v215, 116
      %v278 = vpop.permute.xlu0 %277
      %279 = vrot.lane.b32.xlu0 %v216, 116
      %v280 = vpop.permute.xlu0 %279
      %vm281 = vcmask 949248
      %v282 = vsel %vm281, %v274, %v276
      %v283 = vsel %vm281, %v278, %v280
      %286 = vrot.lane.b32.xlu0 %v213, 108
      %v287 = vpop.permute.xlu0 %286
      %288 = vrot.lane.b32.xlu0 %v214, 108
      %v289 = vpop.permute.xlu0 %288
      %290 = vrot.lane.b32.xlu0 %v215, 108
      %v291 = vpop.permute.xlu0 %290
      %292 = vrot.lane.b32.xlu0 %v216, 108
      %v293 = vpop.permute.xlu0 %292
      %vm294 = vcmask 883712
      %v295 = vsel %vm294, %v287, %v289
      %v296 = vsel %vm294, %v291, %v293
      %299 = vrot.lane.b32.xlu0 %v213, 107
      %v300 = vpop.permute.xlu0 %299
      %301 = vrot.lane.b32.xlu0 %v214, 107
      %v302 = vpop.permute.xlu0 %301
      %303 = vrot.lane.b32.xlu0 %v215, 107
      %v304 = vpop.permute.xlu0 %303
      %305 = vrot.lane.b32.xlu0 %v216, 107
      %v306 = vpop.permute.xlu0 %305
      %vm307 = vcmask 875520
      %v308 = vsel %vm307, %v300, %v302
      %v309 = vsel %vm307, %v304, %v306
      %312 = vrot.lane.b32.xlu0 %v213, 106
      %v313 = vpop.permute.xlu0 %312
      %314 = vrot.lane.b32.xlu0 %v214, 106
      %v315 = vpop.permute.xlu0 %314
      %316 = vrot.lane.b32.xlu0 %v215, 106
      %v317 = vpop.permute.xlu0 %316
      %318 = vrot.lane.b32.xlu0 %v216, 106
      %v319 = vpop.permute.xlu0 %318
      %vm320 = vcmask 867328
      %v321 = vsel %vm320, %v313, %v315
      %v322 = vsel %vm320, %v317, %v319
      %v325 = vld [vmem:[%s1] sm:$0xff]
      %v326 = vld [vmem:[%s1 + $0x8] sm:$0xff]
      %v327 = vld [vmem:[%s1 + $0x10] sm:$0xff]
      %v328 = vld [vmem:[%s1 + $0x18] sm:$0xff]
      %v329 = vld [vmem:[%s1 + $0x20] sm:$0xff]
      %v330 = vld [vmem:[%s1 + $0x28] sm:$0xff]
      %v331 = vld [vmem:[%s1 + $0x30] sm:$0xff]
      %v332 = vld [vmem:[%s1 + $0x38] sm:$0xff]
      %vm333 = vcmask 130048
      %v335 = vsel %vm333, %v326, 0
      %v338 = vsel %vm333, %v328, 0
      %v341 = vsel %vm333, %v330, 0
      %v344 = vsel %vm333, %v332, 0
      %346 = vmatprep.subr.mxu0 0.0
      %347 = vmatpush1.msra.mxu0 %v213
      %348 = vmatprep.subr.mxu0 0.0
      %349 = vmatpush1.msra.mxu0 %v215
      %350 = vmatprep.subr.mxu0 0.0
      %351 = vmatpush1.msra.mxu0 %v230
      %352 = vmatprep.subr.mxu0 0.0
      %353 = vmatpush1.msra.mxu0 %v231
      %354 = vmatprep.subr.mxu0 0.0
      %355 = vmatpush1.msra.mxu0 %v243
      %356 = vmatprep.subr.mxu0 0.0
      %357 = vmatpush1.msra.mxu0 %v244
      %358 = vmatprep.subr.mxu0 0.0
      %359 = vmatpush1.msra.mxu0 %v256
      %360 = vmatprep.subr.mxu0 0.0
      %361 = vmatpush1.msra.mxu0 %v257
      %362 = vmatprep.subr.mxu0 0.0
      %363 = vmatpush1.msra.mxu0 %v269
      %364 = vmatprep.subr.mxu0 0.0
      %365 = vmatpush1.msra.mxu0 %v270
      %366 = vmatprep.subr.mxu0 0.0
      %367 = vmatpush1.msra.mxu0 %v282
      %368 = vmatprep.subr.mxu0 0.0
      %369 = vmatpush1.msra.mxu0 %v283
      %370 = vmatprep.subr.mxu0 0.0
      %371 = vmatpush1.msra.mxu0 %v295
      %372 = vmatprep.subr.mxu0 0.0
      %373 = vmatpush1.msra.mxu0 %v296
      %374 = vmatprep.subr.mxu0 0.0
      %375 = vmatpush1.msra.mxu0 %v308
      %376 = vmatprep.subr.mxu0 0.0
      %377 = vmatpush1.msra.mxu0 %v309
      %378 = vmatprep.subr.mxu0 0.0
      %379 = vmatpush1.msra.mxu0 %v321
      %380 = vmatprep.subr.mxu0 0.0
      %381 = vmatpush1.msra.mxu0 %v322
      %382 = vmatprep.subr.mxu0 0.0
      %383 = vmatpush1.msra.mxu0 0.0
      %384 = vmatprep.subr.mxu0 0.0
      %385 = vmatpush1.msra.mxu0 0.0
      %386 = vmatprep.subr.mxu0 0.0
      %387 = vmatpush1.msra.mxu0 0.0
      %388 = vmatprep.subr.mxu0 0.0
      %389 = vmatpush1.msra.mxu0 0.0
      %390 = vmatprep.subr.mxu0 0.0
      %391 = vmatpush1.msra.mxu0 0.0
      %392 = vmatprep.subr.mxu0 0.0
      %393 = vmatpush1.msra.mxu0 0.0
      %394 = vmatprep.subr.mxu0 0.0
      %395 = vmatpush1.msra.mxu0 0.0
      %396 = vmatprep.subr.mxu0 0.0
      %397 = vmatpush1.msra.mxu0 0.0
      %398 = vmatprep.subr.mxu0 0.0
      %399 = vmatpush1.msra.mxu0 0.0
      %400 = vmatprep.subr.mxu0 0.0
      %401 = vmatpush1.msra.mxu0 0.0
      %402 = vmatprep.subr.mxu0 0.0
      %403 = vmatpush1.msra.mxu0 0.0
      %404 = vmatprep.subr.mxu0 0.0
      %405 = vmatpush1.msra.mxu0 0.0
      %406 = vmatprep.subr.mxu0 0.0
      %407 = vmatpush1.msra.mxu0 0.0
      %408 = vmatprep.subr.mxu0 0.0
      %409 = vmatpush1.msra.mxu0 0.0
      %410 = vmatprep.mubr.f32.mxu0 %v335
      %411 = vmatmul.mubr.f32.gmra.mrb[0].mxu0 %v325
      %v412 = vpop.f32.mrb[0].mxu0
      %v413 = vadd.f32 0.0, %v412
      %v414 = vpop.f32.mrb[0].mxu0
      %415 = vmatprep.mubr.f32.mxu0 %v338
      %416 = vmatmul.mubr.f32.gmra.mrb[0].mxu0 %v327
      %v417 = vpop.f32.mrb[0].mxu0
      %v418 = vadd.f32 0.0, %v417
      %v419 = vpop.f32.mrb[0].mxu0
      %420 = vmatprep.mubr.f32.mxu0 %v341
      %421 = vmatmul.mubr.f32.gmra.mrb[0].mxu0 %v329
      %v422 = vpop.f32.mrb[0].mxu0
      %v423 = vadd.f32 0.0, %v422
      %v424 = vpop.f32.mrb[0].mxu0
      %425 = vmatprep.mubr.f32.mxu0 %v344
      %426 = vmatmul.mubr.f32.gmra.mrb[0].mxu0 %v331
      %v427 = vpop.f32.mrb[0].mxu0
      %v428 = vadd.f32 0.0, %v427
      %v429 = vpop.f32.mrb[0].mxu0
      %430 = vdwg.mxu0
      %v431 = vld [vmem:[%s2] sm:$0x1]
      %v433 = vlaneseq
      %v434 = vshrl.u32 %v433, 7
      %v435 = vsub.s32 0, %v434
      %v436 = vrot.slane %v431, %v435
      %v438 = vmul.f32 %v413, %v436
      %v439 = vmul.f32 %v418, %v436
      %v440 = vmul.f32 %v423, %v436
      %v441 = vmul.f32 %v428, %v436
      %442 = vadd.xlane.f32.xlu0 %v438
      %v443 = vpop.xlane.xlu0 %442
      %444 = vadd.xlane.f32.xlu0 %v439
      %v445 = vpop.xlane.xlu0 %444
      %446 = vadd.xlane.f32.xlu0 %v440
      %v447 = vpop.xlane.xlu0 %446
      %448 = vadd.xlane.f32.xlu0 %v441
      %v449 = vpop.xlane.xlu0 %448
      %v450 = vmul.f32 %v443, 0.015625
      %v451 = vmul.f32 %v445, 0.015625
      %v452 = vmul.f32 %v447, 0.015625
      %v453 = vmul.f32 %v449, 0.015625
      %v454 = vsub.f32 %v413, %v450
      %v455 = vsub.f32 %v418, %v451
      %v456 = vsub.f32 %v423, %v452
      %v457 = vsub.f32 %v428, %v453
      %v458 = vmul.f32 %v454, %v436
      %v459 = vmul.f32 %v455, %v436
      %v460 = vmul.f32 %v456, %v436
      %v461 = vmul.f32 %v457, %v436
      %vm462 = vcmask 7168
      %463 = vst.msk [vmem:[%s205] sm:$0xff] %vm462, %v443
      %464 = vst.msk [vmem:[%s205 + $0x8] sm:$0xff] %vm462, %v445
      %465 = vst.msk [vmem:[%s205 + $0x10] sm:$0xff] %vm462, %v447
      %466 = vst.msk [vmem:[%s205 + $0x18] sm:$0xff] %vm462, %v449
      %v467 = vmul.f32 %v458, %v458
      %v468 = vmul.f32 %v459, %v459
      %v469 = vmul.f32 %v460, %v460
      %v470 = vmul.f32 %v461, %v461
      %471 = vadd.xlane.f32.xlu0 %v467
      %v472 = vpop.xlane.xlu0 %471
      %473 = vadd.xlane.f32.xlu0 %v468
      %v474 = vpop.xlane.xlu0 %473
      %475 = vadd.xlane.f32.xlu0 %v469
      %v476 = vpop.xlane.xlu0 %475
      %477 = vadd.xlane.f32.xlu0 %v470
      %v478 = vpop.xlane.xlu0 %477
      %479 = vst.msk [vmem:[%s210] sm:$0xff] %vm462, %v472
      %480 = vst.msk [vmem:[%s210 + $0x8] sm:$0xff] %vm462, %v474
      %481 = vst.msk [vmem:[%s210 + $0x10] sm:$0xff] %vm462, %v476
      %482 = vst.msk [vmem:[%s210 + $0x18] sm:$0xff] %vm462, %v478
      %p483 = scmp.lt.s32.totalorder %s16, 1
      %s484 = scalar_select %p483, %s16, 1
      %s485 = smul.addr %s484, 4
      %s486 = smul.addr %s485, 8
      %s487 = scalar_lea.vmem %s3, %s486
      %p488 = scmp.lt.s32.totalorder %s16, 1
      %s489 = scalar_select %p488, %s16, 1
      %s490 = smul.addr %s489, 4
      %s491 = smul.addr %s490, 8
      %s492 = scalar_lea.vmem %s4, %s491
      // Predicated region
      $region33: #{ae_decoder2d.4} parent=31 // pred_check
        %p493 = pneg %p102
      $region34: #{ae_decoder2d.4} parent=31 // pred_check_branch
        %495 = sbr.rel (%p493) target = $region36
      $region35: #{ae_decoder2d.4} parent=31 // pred_region
        _
      $region36: #{ae_decoder2d.4} parent=31 // pred_fallthru
        _
      // Predicated region
      $region37: #{ae_decoder2d.4} parent=31 // pred_check
        %p496 = pneg %p128
      $region38: #{ae_decoder2d.4} parent=31 // pred_check_branch
        %498 = sbr.rel (%p496) target = $region40
      $region39: #{ae_decoder2d.4} parent=31 // pred_region
        _
      $region40: #{ae_decoder2d.4} parent=31 // pred_fallthru
        _
    $region32: #{ae_decoder2d.4} parent=5 // pred_fallthru
      _
    %p499 = scmp.le.s32.totalorder 2, %s11
    // Predicated region
    $region41: #{ae_decoder2d.4} parent=5 // pred_check
      %p500 = pneg %p499
    $region42: #{ae_decoder2d.4} parent=5 // pred_check_branch
      %502 = sbr.rel (%p500) target = $region44
    $region43: #{ae_decoder2d.4} parent=5 // pred_region
      %s503 = ssub.s32 %s11, 2
      // Predicated region
      $region45: #{ae_decoder2d.4} parent=43 // pred_check
        %p504 = pneg %p108
      $region46: #{ae_decoder2d.4} parent=43 // pred_check_branch
        %506 = sbr.rel (%p504) target = $region48
      $region47: #{ae_decoder2d.4} parent=43 // pred_region
        %p507 = scmp.lt.s32.totalorder %s17, 1
        %s508 = scalar_select %p507, %s17, 1
        %s509 = smul.addr %s508, 4
        %s510 = smul.addr %s509, 8
        %s511 = scalar_lea.vmem %s3, %s510
      $region48: #{ae_decoder2d.4} parent=43 // pred_fallthru
        _
      // Predicated region
      $region49: #{ae_decoder2d.4} parent=43 // pred_check
        %p512 = pneg %p134
      $region50: #{ae_decoder2d.4} parent=43 // pred_check_branch
        %514 = sbr.rel (%p512) target = $region52
      $region51: #{ae_decoder2d.4} parent=43 // pred_region
        %p515 = scmp.lt.s32.totalorder %s17, 1
        %s516 = scalar_select %p515, %s17, 1
        %s517 = smul.addr %s516, 4
        %s518 = smul.addr %s517, 8
        %s519 = scalar_lea.vmem %s4, %s518
      $region52: #{ae_decoder2d.4} parent=43 // pred_fallthru
        _
    $region44: #{ae_decoder2d.4} parent=5 // pred_fallthru
      _
  $region6: #{ae_decoder2d.4} parent=0 // loop_footer
    %s15 = sadd.s32 1, %s11
  $region7: #{ae_decoder2d.4} parent=0 // loop_footer_branch
    %10 = sbr.rel target = $region3
  $region8: #{ae_decoder2d.4} parent=0 // loop_exit
    _

// kernel: tile.2
$region0: #{tile.2}
  %s0 = inlined_call_operand.vmem [shape: f32[4,4], index: 0, kind: input, shape index: {}]
  %s1 = inlined_call_operand.vmem [shape: f32[16,1], index: 1, kind: output, shape index: {}]
  $region1: #{tile.2} parent=0
    #allocation0 [shape = 'u8[4096]{0}', space=vmem, size = 0x1000, scoped, tag = 'scoped mem for input reshape']
    %s3 = sshllo.u32 0, 4
    %v4 = vld [vmem:[%s0] sm:%s3]
    %5 = vst [vmem:[#allocation0] sm:%s3] %v4
    %v6 = vld [vmem:[#allocation0] sm:$0xf]
    %vm7 = vcmask 7168
    %8 = vst.msk [vmem:[%s1] ss:$4 sm:$0xf] %vm7, %v6
    %v9 = vld [vmem:[#allocation0] sm:$0xf]
    %10 = vrot.lane.b32.xlu0 %v9, 127
    %v11 = vpop.permute.xlu0 %10
    %vm12 = vcmask 7168
    %s13 = scalar_lea.vmem %s1, 1
    %14 = vst.msk [vmem:[%s13] ss:$4 sm:$0xf] %vm12, %v11
    %v15 = vld [vmem:[#allocation0] sm:$0xf]
    %16 = vrot.lane.b32.xlu0 %v15, 126
    %v17 = vpop.permute.xlu0 %16
    %vm18 = vcmask 7168
    %s19 = scalar_lea.vmem %s1, 2
    %20 = vst.msk [vmem:[%s19] ss:$4 sm:$0xf] %vm18, %v17
    %v21 = vld [vmem:[#allocation0] sm:$0xf]
    %22 = vrot.lane.b32.xlu0 %v21, 125
    %v23 = vpop.permute.xlu0 %22
    %vm24 = vcmask 7168
    %s25 = scalar_lea.vmem %s1, 3
    %26 = vst.msk [vmem:[%s25] ss:$4 sm:$0xf] %vm24, %v23

// kernel: ae_decoder2d.6
$region0: #{ae_decoder2d.6}
  #allocation0 [shape = 'u32[]', space=smem, size = 0x4, offset = 0x4, fixed_abs, tag = 'smem constant byte address 0x4 - core index']
  #allocation1 [shape = 'u32[144,128]{1,0:T(1,128)}', space=vmem, size = 0x12000, scoped, tag = 'internal scratch']
  %s0 = inlined_call_operand.vmem [shape: bf16[2,8,512], index: 0, kind: input, shape index: {}]
  %s1 = inlined_call_operand.vmem [shape: f32[16,72], index: 1, kind: input, shape index: {}]
  %s2 = inlined_call_operand.vmem [shape: f32[1,384], index: 2, kind: input, shape index: {}]
  %s3 = inlined_call_operand.vmem [shape: f32[2,16,1], index: 3, kind: output, shape index: {0}]
  %s4 = inlined_call_operand.vmem [shape: f32[2,16,1], index: 4, kind: output, shape index: {1}]
  %5 = xla_tuple %s3, %s4
  %s6 = sld [smem:[#allocation0]]
  $region53: #{ae_decoder2d.6} parent=0
    _
  %s8 = ssub.s32 1, %s6
  %s9 = scalar_select 0, %s8, %s6
  loop: start=0, step=1, limit=4
  $region2: #{ae_decoder2d.6} parent=0 // loop_pre_header
    _
  $region3: #{ae_decoder2d.6} parent=0 // loop_header
    %s11 = sphi 0, %s15
    %p12 = scmp.ge.s32.totalorder %s11, 4
    %s21 = sphi 0, %s23
    %s24 = sphi 0, %s21
    %s25 = sphi 0, %s24
    %s41 = sphi 0, %s25
    %s45 = sphi 0, %s45
    %s47 = sphi 0, %s45
    %s48 = sphi 0, %s47
    %s62 = sphi 0, %s48
    %s66 = sphi 0, %s66
    %s68 = sphi 0, %s66
    %s69 = sphi 0, %s68
    %s83 = sphi 0, %s69
    %s89 = sphi 0, %s91
    %s92 = sphi 0, %s89
    %s93 = sphi 0, %s92
    %s109 = sphi 0, %s93
    %s115 = sphi 0, %s117
    %s118 = sphi 0, %s115
    %s119 = sphi 0, %s118
    %s135 = sphi 0, %s119
  $region4: #{ae_decoder2d.6} parent=0 // loop_header_branch
    %14 = sbr.rel (%p12) target = $region8
  $region5: #{ae_decoder2d.6} parent=0 // loop_body
    %s16 = ssub.s32 %s11, 1
    %s17 = ssub.s32 %s11, 2
    %s18 = sadd.s32 %s11, 1
    %s19 = ssub.s32 %s11, %s18
    %p20 = scmp.eq.s32.totalorder %s19, 0
    %s22 = sadd.s32 %s21, 1
    %s23 = scalar_select %p20, %s21, %s22
    %p26 = pneg %p20
    %p27 = scmp.eq.s32.totalorder %s11, 1
    %p28 = por %p26, %p27
    %p29 = scmp.ne.s32.totalorder %s21, %s24
    %p30 = scmp.eq.s32.totalorder %s11, 0
    %p31 = por %p29, %p30
    %p32 = scmp.ne.s32.totalorder %s21, %s24
    %p33 = scmp.eq.s32.totalorder %s16, 1
    %p34 = por %p32, %p33
    %p35 = scmp.ne.s32.totalorder %s24, %s25
    %p36 = scmp.eq.s32.totalorder %s16, 0
    %p37 = por %p35, %p36
    %p38 = scmp.ne.s32.totalorder %s24, %s25
    %p39 = scmp.eq.s32.totalorder %s17, 1
    %p40 = por %p38, %p39
    %p42 = scmp.ne.s32.totalorder %s25, %s41
    %p43 = scmp.eq.s32.totalorder %s17, 0
    %p44 = por %p42, %p43
    %s46 = sadd.s32 %s45, 1
    %p49 = scmp.eq.s32.totalorder %s11, 1
    %p50 = scmp.ne.s32.totalorder %s45, %s47
    %p51 = scmp.eq.s32.totalorder %s11, 0
    %p52 = por %p50, %p51
    %p53 = scmp.ne.s32.totalorder %s45, %s47
    %p54 = scmp.eq.s32.totalorder %s16, 1
    %p55 = por %p53, %p54
    %p56 = scmp.ne.s32.totalorder %s47, %s48
    %p57 = scmp.eq.s32.totalorder %s16, 0
    %p58 = por %p56, %p57
    %p59 = scmp.ne.s32.totalorder %s47, %s48
    %p60 = scmp.eq.s32.totalorder %s17, 1
    %p61 = por %p59, %p60
    %p63 = scmp.ne.s32.totalorder %s48, %s62
    %p64 = scmp.eq.s32.totalorder %s17, 0
    %p65 = por %p63, %p64
    %s67 = sadd.s32 %s66, 1
    %p70 = scmp.eq.s32.totalorder %s11, 1
    %p71 = scmp.ne.s32.totalorder %s66, %s68
    %p72 = scmp.eq.s32.totalorder %s11, 0
    %p73 = por %p71, %p72
    %p74 = scmp.ne.s32.totalorder %s66, %s68
    %p75 = scmp.eq.s32.totalorder %s16, 1
    %p76 = por %p74, %p75
    %p77 = scmp.ne.s32.totalorder %s68, %s69
    %p78 = scmp.eq.s32.totalorder %s16, 0
    %p79 = por %p77, %p78
    %p80 = scmp.ne.s32.totalorder %s68, %s69
    %p81 = scmp.eq.s32.totalorder %s17, 1
    %p82 = por %p80, %p81
    %p84 = scmp.ne.s32.totalorder %s69, %s83
    %p85 = scmp.eq.s32.totalorder %s17, 0
    %p86 = por %p84, %p85
    %s87 = ssub.s32 %s11, %s18
    %p88 = scmp.eq.s32.totalorder %s87, 0
    %s90 = sadd.s32 %s89, 1
    %s91 = scalar_select %p88, %s89, %s90
    %p94 = pneg %p88
    %p95 = scmp.eq.s32.totalorder %s11, 1
    %p96 = por %p94, %p95
    %p97 = scmp.ne.s32.totalorder %s89, %s92
    %p98 = scmp.eq.s32.totalorder %s11, 0
    %p99 = por %p97, %p98
    %p100 = scmp.ne.s32.totalorder %s89, %s92
    %p101 = scmp.eq.s32.totalorder %s16, 1
    %p102 = por %p100, %p101
    %p103 = scmp.ne.s32.totalorder %s92, %s93
    %p104 = scmp.eq.s32.totalorder %s16, 0
    %p105 = por %p103, %p104
    %p106 = scmp.ne.s32.totalorder %s92, %s93
    %p107 = scmp.eq.s32.totalorder %s17, 1
    %p108 = por %p106, %p107
    %p110 = scmp.ne.s32.totalorder %s93, %s109
    %p111 = scmp.eq.s32.totalorder %s17, 0
    %p112 = por %p110, %p111
    %s113 = ssub.s32 %s11, %s18
    %p114 = scmp.eq.s32.totalorder %s113, 0
    %s116 = sadd.s32 %s115, 1
    %s117 = scalar_select %p114, %s115, %s116
    %p120 = pneg %p114
    %p121 = scmp.eq.s32.totalorder %s11, 1
    %p122 = por %p120, %p121
    %p123 = scmp.ne.s32.totalorder %s115, %s118
    %p124 = scmp.eq.s32.totalorder %s11, 0
    %p125 = por %p123, %p124
    %p126 = scmp.ne.s32.totalorder %s115, %s118
    %p127 = scmp.eq.s32.totalorder %s16, 1
    %p128 = por %p126, %p127
    %p129 = scmp.ne.s32.totalorder %s118, %s119
    %p130 = scmp.eq.s32.totalorder %s16, 0
    %p131 = por %p129, %p130
    %p132 = scmp.ne.s32.totalorder %s118, %s119
    %p133 = scmp.eq.s32.totalorder %s17, 1
    %p134 = por %p132, %p133
    %p136 = scmp.ne.s32.totalorder %s119, %s135
    %p137 = scmp.eq.s32.totalorder %s17, 0
    %p138 = por %p136, %p137
    %p139 = scmp.le.s32.totalorder 1, %s11
    %p140 = scmp.lt.s32.totalorder %s11, 3
    %p141 = pnand %p139, %p140
    %p142 = pneg %p141
    // Predicated region
    $region9: #{ae_decoder2d.6} parent=5 // pred_check
      _
    $region10: #{ae_decoder2d.6} parent=5 // pred_check_branch
      %144 = sbr.rel (%p141) target = $region12
    $region11: #{ae_decoder2d.6} parent=5 // pred_region
      %s145 = ssub.s32 %s11, 1
      // Predicated region
      $region13: #{ae_decoder2d.6} parent=11 // pred_check
        %p146 = pneg %p58
      $region14: #{ae_decoder2d.6} parent=11 // pred_check_branch
        %148 = sbr.rel (%p146) target = $region16
      $region15: #{ae_decoder2d.6} parent=11 // pred_region
        _
      $region16: #{ae_decoder2d.6} parent=11 // pred_fallthru
        _
      // Predicated region
      $region17: #{ae_decoder2d.6} parent=11 // pred_check
        %p149 = pneg %p79
      $region18: #{ae_decoder2d.6} parent=11 // pred_check_branch
        %151 = sbr.rel (%p149) target = $region20
      $region19: #{ae_decoder2d.6} parent=11 // pred_region
        _
      $region20: #{ae_decoder2d.6} parent=11 // pred_fallthru
        _
    $region12: #{ae_decoder2d.6} parent=5 // pred_fallthru
      _
    %p152 = scmp.lt.s32.totalorder %s11, 2
    // Predicated region
    $region21: #{ae_decoder2d.6} parent=5 // pred_check
      %p153 = pneg %p152
    $region22: #{ae_decoder2d.6} parent=5 // pred_check_branch
      %155 = sbr.rel (%p153) target = $region24
    $region23: #{ae_decoder2d.6} parent=5 // pred_region
      // Predicated region
      $region25: #{ae_decoder2d.6} parent=23 // pred_check
        %p156 = pneg %p31
      $region26: #{ae_decoder2d.6} parent=23 // pred_check_branch
        %158 = sbr.rel (%p156) target = $region28
      $region27: #{ae_decoder2d.6} parent=23 // pred_region
        %p159 = scmp.lt.s32.totalorder %s11, 1
        %s160 = scalar_select %p159, %s11, 1
        %s161 = smul.addr %s160, 4
        %s162 = smul.addr %s161, 4
        %s163 = scalar_lea.vmem %s0, %s162
      $region28: #{ae_decoder2d.6} parent=23 // pred_fallthru
        _
    $region24: #{ae_decoder2d.6} parent=5 // pred_fallthru
      _
    %p164 = scmp.le.s32.totalorder 1, %s11
    %p165 = scmp.lt.s32.totalorder %s11, 3
    %p166 = pnand %p164, %p165
    %p167 = pneg %p166
    // Predicated region
    $region29: #{ae_decoder2d.6} parent=5 // pred_check
      _
    $region30: #{ae_decoder2d.6} parent=5 // pred_check_branch
      %169 = sbr.rel (%p166) target = $region32
    $region31: #{ae_decoder2d.6} parent=5 // pred_region
      %s170 = ssub.s32 %s11, 1
      %p171 = scmp.lt.s32.totalorder %s16, 1
      %s172 = scalar_select %p171, %s16, 1
      %s173 = smul.addr %s172, 4
      %s174 = smul.addr %s173, 4
      %s175 = scalar_lea.vmem %s0, %s174
      %p176 = pneg %p37
      %p177 = pneg %p34
      %p178 = pneg %p58
      %p179 = pneg %p55
      %p180 = pneg %p79
      %p181 = pneg %p76
      %p182 = pneg %p105
      %p183 = pneg %p102
      %p184 = scmp.lt.s32.totalorder %s16, 1
      %s185 = scalar_select %p184, %s16, 1
      %s186 = smul.addr %s185, 2
      %s187 = smul.addr %s186, 8
      %s188 = scalar_lea.vmem %s3, %s187
      %p189 = pneg %p131
      %p190 = pneg %p128
      %p191 = scmp.lt.s32.totalorder %s16, 1
      %s192 = scalar_select %p191, %s16, 1
      %s193 = smul.addr %s192, 2
      %s194 = smul.addr %s193, 8
      %s195 = scalar_lea.vmem %s4, %s194
      %p196 = scmp.lt.s32.totalorder %s16, 1
      %s197 = scalar_select %p196, %s16, 1
      %s198 = smul.addr %s197, 4
      %s199 = smul.addr %s198, 4
      %s200 = scalar_lea.vmem %s0, %s199
      %p201 = scmp.lt.s32.totalorder %s16, 1
      %s202 = scalar_select %p201, %s16, 1
      %s203 = smul.addr %s202, 2
      %s204 = smul.addr %s203, 8
      %s205 = scalar_lea.vmem %s3, %s204
      %p206 = scmp.lt.s32.totalorder %s16, 1
      %s207 = scalar_select %p206, %s16, 1
      %s208 = smul.addr %s207, 2
      %s209 = smul.addr %s208, 8
      %s210 = scalar_lea.vmem %s4, %s209
      %v211 = vld [vmem:[%s200] sm:$0xff]
      %v212 = vld [vmem:[%s200 + $0x8] sm:$0xff]
      %v213 = vunpack.c.l.bf16 %v211
      %v214 = vunpack.c.h.bf16 %v211
      %v215 = vunpack.c.l.bf16 %v212
      %v216 = vunpack.c.h.bf16 %v212
      %221 = vrot.lane.b32.xlu0 %v213, 127
      %v222 = vpop.permute.xlu0 %221
      %223 = vrot.lane.b32.xlu0 %v214, 127
      %v224 = vpop.permute.xlu0 %223
      %225 = vrot.lane.b32.xlu0 %v215, 127
      %v226 = vpop.permute.xlu0 %225
      %227 = vrot.lane.b32.xlu0 %v216, 127
      %v228 = vpop.permute.xlu0 %227
      %vm229 = vcmask 1039360
      %v230 = vsel %vm229, %v222, %v224
      %v231 = vsel %vm229, %v224, %v226
      %v232 = vsel %vm229, %v226, %v228
      %236 = vrot.lane.b32.xlu0 %v213, 126
      %v237 = vpop.permute.xlu0 %236
      %238 = vrot.lane.b32.xlu0 %v214, 126
      %v239 = vpop.permute.xlu0 %238
      %240 = vrot.lane.b32.xlu0 %v215, 126
      %v241 = vpop.permute.xlu0 %240
      %242 = vrot.lane.b32.xlu0 %v216, 126
      %v243 = vpop.permute.xlu0 %242
      %vm244 = vcmask 1031168
      %v245 = vsel %vm244, %v237, %v239
      %v246 = vsel %vm244, %v239, %v241
      %v247 = vsel %vm244, %v241, %v243
      %251 = vrot.lane.b32.xlu0 %v213, 110
      %v252 = vpop.permute.xlu0 %251
      %253 = vrot.lane.b32.xlu0 %v214, 110
      %v254 = vpop.permute.xlu0 %253
      %255 = vrot.lane.b32.xlu0 %v215, 110
      %v256 = vpop.permute.xlu0 %255
      %257 = vrot.lane.b32.xlu0 %v216, 110
      %v258 = vpop.permute.xlu0 %257
      %vm259 = vcmask 900096
      %v260 = vsel %vm259, %v252, %v254
      %v261 = vsel %vm259, %v254, %v256
      %v262 = vsel %vm259, %v256, %v258
      %266 = vrot.lane.b32.xlu0 %v213, 109
      %v267 = vpop.permute.xlu0 %266
      %268 = vrot.lane.b32.xlu0 %v214, 109
      %v269 = vpop.permute.xlu0 %268
      %270 = vrot.lane.b32.xlu0 %v215, 109
      %v271 = vpop.permute.xlu0 %270
      %272 = vrot.lane.b32.xlu0 %v216, 109
      %v273 = vpop.permute.xlu0 %272
      %vm274 = vcmask 891904
      %v275 = vsel %vm274, %v267, %v269
      %v276 = vsel %vm274, %v269, %v271
      %v277 = vsel %vm274, %v271, %v273
      %281 = vrot.lane.b32.xlu0 %v213, 108
      %v282 = vpop.permute.xlu0 %281
      %283 = vrot.lane.b32.xlu0 %v214, 108
      %v284 = vpop.permute.xlu0 %283
      %285 = vrot.lane.b32.xlu0 %v215, 108
      %v286 = vpop.permute.xlu0 %285
      %287 = vrot.lane.b32.xlu0 %v216, 108
      %v288 = vpop.permute.xlu0 %287
      %vm289 = vcmask 883712
      %v290 = vsel %vm289, %v282, %v284
      %v291 = vsel %vm289, %v284, %v286
      %v292 = vsel %vm289, %v286, %v288
      %296 = vrot.lane.b32.xlu0 %v213, 92
      %v297 = vpop.permute.xlu0 %296
      %298 = vrot.lane.b32.xlu0 %v214, 92
      %v299 = vpop.permute.xlu0 %298
      %300 = vrot.lane.b32.xlu0 %v215, 92
      %v301 = vpop.permute.xlu0 %300
      %302 = vrot.lane.b32.xlu0 %v216, 92
      %v303 = vpop.permute.xlu0 %302
      %vm304 = vcmask 752640
      %v305 = vsel %vm304, %v297, %v299
      %v306 = vsel %vm304, %v299, %v301
      %v307 = vsel %vm304, %v301, %v303
      %311 = vrot.lane.b32.xlu0 %v213, 91
      %v312 = vpop.permute.xlu0 %311
      %313 = vrot.lane.b32.xlu0 %v214, 91
      %v314 = vpop.permute.xlu0 %313
      %315 = vrot.lane.b32.xlu0 %v215, 91
      %v316 = vpop.permute.xlu0 %315
      %317 = vrot.lane.b32.xlu0 %v216, 91
      %v318 = vpop.permute.xlu0 %317
      %vm319 = vcmask 744448
      %v320 = vsel %vm319, %v312, %v314
      %v321 = vsel %vm319, %v314, %v316
      %v322 = vsel %vm319, %v316, %v318
      %326 = vrot.lane.b32.xlu0 %v213, 90
      %v327 = vpop.permute.xlu0 %326
      %328 = vrot.lane.b32.xlu0 %v214, 90
      %v329 = vpop.permute.xlu0 %328
      %330 = vrot.lane.b32.xlu0 %v215, 90
      %v331 = vpop.permute.xlu0 %330
      %332 = vrot.lane.b32.xlu0 %v216, 90
      %v333 = vpop.permute.xlu0 %332
      %vm334 = vcmask 736256
      %v335 = vsel %vm334, %v327, %v329
      %v336 = vsel %vm334, %v329, %v331
      %v337 = vsel %vm334, %v331, %v333
      %v341 = vld [vmem:[%s1] sm:$0xff]
      %v342 = vld [vmem:[%s1 + $0x8] sm:$0xff]
      %vm343 = vcmask 588800
      %v345 = vsel %vm343, %v341, 0
      %v348 = vsel %vm343, %v342, 0
      %350 = vmatprep.subr.mxu0 %v214
      %351 = vmatpush1.msra.mxu0 %v213
      %352 = vmatprep.subr.mxu0 %v231
      %353 = vmatpush1.msra.mxu0 %v230
      %354 = vmatprep.subr.mxu0 %v246
      %355 = vmatpush1.msra.mxu0 %v245
      %356 = vmatprep.subr.mxu0 %v261
      %357 = vmatpush1.msra.mxu0 %v260
      %358 = vmatprep.subr.mxu0 %v276
      %359 = vmatpush1.msra.mxu0 %v275
      %360 = vmatprep.subr.mxu0 %v291
      %361 = vmatpush1.msra.mxu0 %v290
      %362 = vmatprep.subr.mxu0 %v306
      %363 = vmatpush1.msra.mxu0 %v305
      %364 = vmatprep.subr.mxu0 %v321
      %365 = vmatpush1.msra.mxu0 %v320
      %366 = vmatprep.subr.mxu0 %v336
      %367 = vmatpush1.msra.mxu0 %v335
      %368 = vmatprep.subr.mxu0 0.0
      %369 = vmatpush1.msra.mxu0 0.0
      %370 = vmatprep.subr.mxu0 0.0
      %371 = vmatpush1.msra.mxu0 0.0
      %372 = vmatprep.subr.mxu0 0.0
      %373 = vmatpush1.msra.mxu0 0.0
      %374 = vmatprep.subr.mxu0 0.0
      %375 = vmatpush1.msra.mxu0 0.0
      %376 = vmatprep.subr.mxu0 0.0
      %377 = vmatpush1.msra.mxu0 0.0
      %378 = vmatprep.subr.mxu0 0.0
      %379 = vmatpush1.msra.mxu0 0.0
      %380 = vmatprep.subr.mxu0 0.0
      %381 = vmatpush1.msra.mxu0 0.0
      %382 = vmatprep.subr.mxu0 0.0
      %383 = vmatpush1.msra.mxu0 0.0
      %384 = vmatprep.subr.mxu0 0.0
      %385 = vmatpush1.msra.mxu0 0.0
      %386 = vmatprep.subr.mxu0 0.0
      %387 = vmatpush1.msra.mxu0 0.0
      %388 = vmatprep.subr.mxu0 0.0
      %389 = vmatpush1.msra.mxu0 0.0
      %390 = vmatprep.subr.mxu0 0.0
      %391 = vmatpush1.msra.mxu0 0.0
      %392 = vmatprep.subr.mxu0 0.0
      %393 = vmatpush1.msra.mxu0 0.0
      %394 = vmatprep.subr.mxu0 0.0
      %395 = vmatpush1.msra.mxu0 0.0
      %396 = vmatprep.subr.mxu0 0.0
      %397 = vmatpush1.msra.mxu0 0.0
      %398 = vmatprep.subr.mxu0 0.0
      %399 = vmatpush1.msra.mxu0 0.0
      %400 = vmatprep.subr.mxu0 0.0
      %401 = vmatpush1.msra.mxu0 0.0
      %402 = vmatprep.subr.mxu0 0.0
      %403 = vmatpush1.msra.mxu0 0.0
      %404 = vmatprep.subr.mxu0 0.0
      %405 = vmatpush1.msra.mxu0 0.0
      %406 = vmatprep.subr.mxu0 0.0
      %407 = vmatpush1.msra.mxu0 0.0
      %408 = vmatprep.subr.mxu0 0.0
      %409 = vmatpush1.msra.mxu0 0.0
      %410 = vmatprep.subr.mxu0 0.0
      %411 = vmatpush1.msra.mxu0 0.0
      %412 = vmatprep.subr.mxu0 0.0
      %413 = vmatpush1.msra.mxu0 0.0
      %414 = vmatprep.mubr.f32.mxu0 0.0
      %415 = vmatmul.mubr.f32.gmra.mrb[0].mxu0 %v345
      %v416 = vpop.f32.mrb[0].mxu0
      %v417 = vadd.f32 0.0, %v416
      %v418 = vpop.f32.mrb[0].mxu0
      %v419 = vadd.f32 0.0, %v418
      %420 = vmatprep.mubr.f32.mxu0 0.0
      %421 = vmatmul.mubr.f32.gmra.mrb[0].mxu0 %v348
      %v422 = vpop.f32.mrb[0].mxu0
      %v423 = vadd.f32 0.0, %v422
      %v424 = vpop.f32.mrb[0].mxu0
      %v425 = vadd.f32 0.0, %v424
      %426 = vdwg.mxu0
      %427 = vmatprep.subr.mxu0 0.0
      %428 = vmatpush1.msra.mxu0 %v215
      %429 = vmatprep.subr.mxu0 0.0
      %430 = vmatpush1.msra.mxu0 %v232
      %431 = vmatprep.subr.mxu0 0.0
      %432 = vmatpush1.msra.mxu0 %v247
      %433 = vmatprep.subr.mxu0 0.0
      %434 = vmatpush1.msra.mxu0 %v262
      %435 = vmatprep.subr.mxu0 0.0
      %436 = vmatpush1.msra.mxu0 %v277
      %437 = vmatprep.subr.mxu0 0.0
      %438 = vmatpush1.msra.mxu0 %v292
      %439 = vmatprep.subr.mxu0 0.0
      %440 = vmatpush1.msra.mxu0 %v307
      %441 = vmatprep.subr.mxu0 0.0
      %442 = vmatpush1.msra.mxu0 %v322
      %443 = vmatprep.subr.mxu0 0.0
      %444 = vmatpush1.msra.mxu0 %v337
      %445 = vmatprep.subr.mxu0 0.0
      %446 = vmatpush1.msra.mxu0 0.0
      %447 = vmatprep.subr.mxu0 0.0
      %448 = vmatpush1.msra.mxu0 0.0
      %449 = vmatprep.subr.mxu0 0.0
      %450 = vmatpush1.msra.mxu0 0.0
      %451 = vmatprep.subr.mxu0 0.0
      %452 = vmatpush1.msra.mxu0 0.0
      %453 = vmatprep.subr.mxu0 0.0
      %454 = vmatpush1.msra.mxu0 0.0
      %455 = vmatprep.subr.mxu0 0.0
      %456 = vmatpush1.msra.mxu0 0.0
      %457 = vmatprep.subr.mxu0 0.0
      %458 = vmatpush1.msra.mxu0 0.0
      %459 = vmatprep.subr.mxu0 0.0
      %460 = vmatpush1.msra.mxu0 0.0
      %461 = vmatprep.subr.mxu0 0.0
      %462 = vmatpush1.msra.mxu0 0.0
      %463 = vmatprep.subr.mxu0 0.0
      %464 = vmatpush1.msra.mxu0 0.0
      %465 = vmatprep.subr.mxu0 0.0
      %466 = vmatpush1.msra.mxu0 0.0
      %467 = vmatprep.subr.mxu0 0.0
      %468 = vmatpush1.msra.mxu0 0.0
      %469 = vmatprep.subr.mxu0 0.0
      %470 = vmatpush1.msra.mxu0 0.0
      %471 = vmatprep.subr.mxu0 0.0
      %472 = vmatpush1.msra.mxu0 0.0
      %473 = vmatprep.subr.mxu0 0.0
      %474 = vmatpush1.msra.mxu0 0.0
      %475 = vmatprep.subr.mxu0 0.0
      %476 = vmatpush1.msra.mxu0 0.0
      %477 = vmatprep.subr.mxu0 0.0
      %478 = vmatpush1.msra.mxu0 0.0
      %479 = vmatprep.subr.mxu0 0.0
      %480 = vmatpush1.msra.mxu0 0.0
      %481 = vmatprep.subr.mxu0 0.0
      %482 = vmatpush1.msra.mxu0 0.0
      %483 = vmatprep.subr.mxu0 0.0
      %484 = vmatpush1.msra.mxu0 0.0
      %485 = vmatprep.subr.mxu0 0.0
      %486 = vmatpush1.msra.mxu0 0.0
      %487 = vmatprep.subr.mxu0 0.0
      %488 = vmatpush1.msra.mxu0 0.0
      %489 = vmatprep.subr.mxu0 0.0
      %490 = vmatpush1.msra.mxu0 0.0
      %491 = vmatprep.mubr.f32.mxu0 0.0
      %492 = vmatmul.mubr.f32.gmra.mrb[0].mxu0 %v345
      %v493 = vpop.f32.mrb[0].mxu0
      %v494 = vadd.f32 0.0, %v493
      %v495 = vpop.f32.mrb[0].mxu0
      %496 = vmatprep.mubr.f32.mxu0 0.0
      %497 = vmatmul.mubr.f32.gmra.mrb[0].mxu0 %v348
      %v498 = vpop.f32.mrb[0].mxu0
      %v499 = vadd.f32 0.0, %v498
      %v500 = vpop.f32.mrb[0].mxu0
      %501 = vdwg.mxu0
      %v502 = vld [vmem:[%s2] sm:$0x7]
      %v504 = vlaneseq
      %v505 = vshrl.u32 %v504, 7
      %v506 = vsub.s32 0, %v505
      %v507 = vrot.slane %v502, %v506
      %v508 = vlaneseq
      %v509 = vshrl.u32 %v508, 7
      %v510 = vsub.s32 1, %v509
      %v511 = vrot.slane %v502, %v510
      %v512 = vlaneseq
      %v513 = vshrl.u32 %v512, 7
      %v514 = vsub.s32 2, %v513
      %v515 = vrot.slane %v502, %v514
      %v519 = vmul.f32 %v417, %v507
      %v520 = vmul.f32 %v419, %v511
      %v521 = vmul.f32 %v494, %v515
      %v522 = vmul.f32 %v423, %v507
      %v523 = vmul.f32 %v425, %v511
      %v524 = vmul.f32 %v499, %v515
      %v525 = vadd.f32 %v519, %v520
      %v526 = vadd.f32 %v525, %v521
      %527 = vadd.xlane.f32.xlu0 %v526
      %v528 = vpop.xlane.xlu0 %527
      %v529 = vadd.f32 %v522, %v523
      %v530 = vadd.f32 %v529, %v524
      %531 = vadd.xlane.f32.xlu0 %v530
      %v532 = vpop.xlane.xlu0 %531
      %v533 = vmul.f32 %v528, 0.00390625
      %v534 = vmul.f32 %v532, 0.00390625
      %v535 = vsub.f32 %v417, %v533
      %v536 = vsub.f32 %v419, %v533
      %v537 = vsub.f32 %v494, %v533
      %v538 = vsub.f32 %v423, %v534
      %v539 = vsub.f32 %v425, %v534
      %v540 = vsub.f32 %v499, %v534
      %v541 = vmul.f32 %v535, %v507
      %v542 = vmul.f32 %v536, %v511
      %v543 = vmul.f32 %v537, %v515
      %v544 = vmul.f32 %v538, %v507
      %v545 = vmul.f32 %v539, %v511
      %v546 = vmul.f32 %v540, %v515
      %vm547 = vcmask 7168
      %548 = vst.msk [vmem:[%s205] sm:$0xff] %vm547, %v528
      %549 = vst.msk [vmem:[%s205 + $0x8] sm:$0xff] %vm547, %v532
      %v550 = vmul.f32 %v541, %v541
      %v551 = vmul.f32 %v542, %v542
      %v552 = vmul.f32 %v543, %v543
      %v553 = vmul.f32 %v544, %v544
      %v554 = vmul.f32 %v545, %v545
      %v555 = vmul.f32 %v546, %v546
      %v556 = vadd.f32 %v550, %v551
      %v557 = vadd.f32 %v556, %v552
      %558 = vadd.xlane.f32.xlu0 %v557
      %v559 = vpop.xlane.xlu0 %558
      %v560 = vadd.f32 %v553, %v554
      %v561 = vadd.f32 %v560, %v555
      %562 = vadd.xlane.f32.xlu0 %v561
      %v563 = vpop.xlane.xlu0 %562
      %564 = vst.msk [vmem:[%s210] sm:$0xff] %vm547, %v559
      %565 = vst.msk [vmem:[%s210 + $0x8] sm:$0xff] %vm547, %v563
      %p566 = scmp.lt.s32.totalorder %s16, 1
      %s567 = scalar_select %p566, %s16, 1
      %s568 = smul.addr %s567, 2
      %s569 = smul.addr %s568, 8
      %s570 = scalar_lea.vmem %s3, %s569
      %p571 = scmp.lt.s32.totalorder %s16, 1
      %s572 = scalar_select %p571, %s16, 1
      %s573 = smul.addr %s572, 2
      %s574 = smul.addr %s573, 8
      %s575 = scalar_lea.vmem %s4, %s574
      // Predicated region
      $region33: #{ae_decoder2d.6} parent=31 // pred_check
        %p576 = pneg %p102
      $region34: #{ae_decoder2d.6} parent=31 // pred_check_branch
        %578 = sbr.rel (%p576) target = $region36
      $region35: #{ae_decoder2d.6} parent=31 // pred_region
        _
      $region36: #{ae_decoder2d.6} parent=31 // pred_fallthru
        _
      // Predicated region
      $region37: #{ae_decoder2d.6} parent=31 // pred_check
        %p579 = pneg %p128
      $region38: #{ae_decoder2d.6} parent=31 // pred_check_branch
        %581 = sbr.rel (%p579) target = $region40
      $region39: #{ae_decoder2d.6} parent=31 // pred_region
        _
      $region40: #{ae_decoder2d.6} parent=31 // pred_fallthru
        _
    $region32: #{ae_decoder2d.6} parent=5 // pred_fallthru
      _
    %p582 = scmp.le.s32.totalorder 2, %s11
    // Predicated region
    $region41: #{ae_decoder2d.6} parent=5 // pred_check
      %p583 = pneg %p582
    $region42: #{ae_decoder2d.6} parent=5 // pred_check_branch
      %585 = sbr.rel (%p583) target = $region44
    $region43: #{ae_decoder2d.6} parent=5 // pred_region
      %s586 = ssub.s32 %s11, 2
      // Predicated region
      $region45: #{ae_decoder2d.6} parent=43 // pred_check
        %p587 = pneg %p108
      $region46: #{ae_decoder2d.6} parent=43 // pred_check_branch
        %589 = sbr.rel (%p587) target = $region48
      $region47: #{ae_decoder2d.6} parent=43 // pred_region
        %p590 = scmp.lt.s32.totalorder %s17, 1
        %s591 = scalar_select %p590, %s17, 1
        %s592 = smul.addr %s591, 2
        %s593 = smul.addr %s592, 8
        %s594 = scalar_lea.vmem %s3, %s593
      $region48: #{ae_decoder2d.6} parent=43 // pred_fallthru
        _
      // Predicated region
      $region49: #{ae_decoder2d.6} parent=43 // pred_check
        %p595 = pneg %p134
      $region50: #{ae_decoder2d.6} parent=43 // pred_check_branch
        %597 = sbr.rel (%p595) target = $region52
      $region51: #{ae_decoder2d.6} parent=43 // pred_region
        %p598 = scmp.lt.s32.totalorder %s17, 1
        %s599 = scalar_select %p598, %s17, 1
        %s600 = smul.addr %s599, 2
        %s601 = smul.addr %s600, 8
        %s602 = scalar_lea.vmem %s4, %s601
      $region52: #{ae_decoder2d.6} parent=43 // pred_fallthru
        _
    $region44: #{ae_decoder2d.6} parent=5 // pred_fallthru
      _
  $region6: #{ae_decoder2d.6} parent=0 // loop_footer
    %s15 = sadd.s32 1, %s11
  $region7: #{ae_decoder2d.6} parent=0 // loop_footer_branch
    %10 = sbr.rel target = $region3
  $region8: #{ae_decoder2d.6} parent=0 // loop_exit
    _

// kernel: ae_decoder2d.7
$region0: #{ae_decoder2d.7}
  #allocation0 [shape = 'u32[]', space=smem, size = 0x4, offset = 0x4, fixed_abs, tag = 'smem constant byte address 0x4 - core index']
  #allocation1 [shape = 'u32[144,128]{1,0:T(1,128)}', space=vmem, size = 0x12000, scoped, tag = 'internal scratch']
  %s0 = inlined_call_operand.vmem [shape: bf16[2,8,512], index: 0, kind: input, shape index: {}]
  %s1 = inlined_call_operand.vmem [shape: f32[16,72], index: 1, kind: input, shape index: {}]
  %s2 = inlined_call_operand.vmem [shape: f32[16,1], index: 2, kind: input, shape index: {}]
  %s3 = inlined_call_operand.vmem [shape: f32[16,1], index: 3, kind: input, shape index: {}]
  %s4 = inlined_call_operand.vmem [shape: f32[12,16], index: 4, kind: input, shape index: {}]
  %s5 = inlined_call_operand.vmem [shape: f32[12,1], index: 5, kind: input, shape index: {}]
  %s6 = inlined_call_operand.vmem [shape: f32[2,12,384], index: 6, kind: output, shape index: {}]
  %s7 = sld [smem:[#allocation0]]
  $region57: #{ae_decoder2d.7} parent=0
    _
  %s9 = ssub.s32 1, %s7
  %s10 = scalar_select 0, %s9, %s7
  loop: start=0, step=1, limit=4
  $region2: #{ae_decoder2d.7} parent=0 // loop_pre_header
    _
  $region3: #{ae_decoder2d.7} parent=0 // loop_header
    %s12 = sphi 0, %s16
    %p13 = scmp.ge.s32.totalorder %s12, 4
    %s22 = sphi 0, %s24
    %s25 = sphi 0, %s22
    %s26 = sphi 0, %s25
    %s42 = sphi 0, %s26
    %s46 = sphi 0, %s46
    %s48 = sphi 0, %s46
    %s49 = sphi 0, %s48
    %s63 = sphi 0, %s49
    %s67 = sphi 0, %s67
    %s69 = sphi 0, %s67
    %s70 = sphi 0, %s69
    %s84 = sphi 0, %s70
    %s88 = sphi 0, %s88
    %s90 = sphi 0, %s88
    %s91 = sphi 0, %s90
    %s105 = sphi 0, %s91
    %s109 = sphi 0, %s109
    %s111 = sphi 0, %s109
    %s112 = sphi 0, %s111
    %s126 = sphi 0, %s112
    %s130 = sphi 0, %s130
    %s132 = sphi 0, %s130
    %s133 = sphi 0, %s132
    %s147 = sphi 0, %s133
    %s153 = sphi 0, %s155
    %s156 = sphi 0, %s153
    %s157 = sphi 0, %s156
    %s173 = sphi 0, %s157
  $region4: #{ae_decoder2d.7} parent=0 // loop_header_branch
    %15 = sbr.rel (%p13) target = $region8
  $region5: #{ae_decoder2d.7} parent=0 // loop_body
    %s17 = ssub.s32 %s12, 1
    %s18 = ssub.s32 %s12, 2
    %s19 = sadd.s32 %s12, 1
    %s20 = ssub.s32 %s12, %s19
    %p21 = scmp.eq.s32.totalorder %s20, 0
    %s23 = sadd.s32 %s22, 1
    %s24 = scalar_select %p21, %s22, %s23
    %p27 = pneg %p21
    %p28 = scmp.eq.s32.totalorder %s12, 1
    %p29 = por %p27, %p28
    %p30 = scmp.ne.s32.totalorder %s22, %s25
    %p31 = scmp.eq.s32.totalorder %s12, 0
    %p32 = por %p30, %p31
    %p33 = scmp.ne.s32.totalorder %s22, %s25
    %p34 = scmp.eq.s32.totalorder %s17, 1
    %p35 = por %p33, %p34
    %p36 = scmp.ne.s32.totalorder %s25, %s26
    %p37 = scmp.eq.s32.totalorder %s17, 0
    %p38 = por %p36, %p37
    %p39 = scmp.ne.s32.totalorder %s25, %s26
    %p40 = scmp.eq.s32.totalorder %s18, 1
    %p41 = por %p39, %p40
    %p43 = scmp.ne.s32.totalorder %s26, %s42
    %p44 = scmp.eq.s32.totalorder %s18, 0
    %p45 = por %p43, %p44
    %s47 = sadd.s32 %s46, 1
    %p50 = scmp.eq.s32.totalorder %s12, 1
    %p51 = scmp.ne.s32.totalorder %s46, %s48
    %p52 = scmp.eq.s32.totalorder %s12, 0
    %p53 = por %p51, %p52
    %p54 = scmp.ne.s32.totalorder %s46, %s48
    %p55 = scmp.eq.s32.totalorder %s17, 1
    %p56 = por %p54, %p55
    %p57 = scmp.ne.s32.totalorder %s48, %s49
    %p58 = scmp.eq.s32.totalorder %s17, 0
    %p59 = por %p57, %p58
    %p60 = scmp.ne.s32.totalorder %s48, %s49
    %p61 = scmp.eq.s32.totalorder %s18, 1
    %p62 = por %p60, %p61
    %p64 = scmp.ne.s32.totalorder %s49, %s63
    %p65 = scmp.eq.s32.totalorder %s18, 0
    %p66 = por %p64, %p65
    %s68 = sadd.s32 %s67, 1
    %p71 = scmp.eq.s32.totalorder %s12, 1
    %p72 = scmp.ne.s32.totalorder %s67, %s69
    %p73 = scmp.eq.s32.totalorder %s12, 0
    %p74 = por %p72, %p73
    %p75 = scmp.ne.s32.totalorder %s67, %s69
    %p76 = scmp.eq.s32.totalorder %s17, 1
    %p77 = por %p75, %p76
    %p78 = scmp.ne.s32.totalorder %s69, %s70
    %p79 = scmp.eq.s32.totalorder %s17, 0
    %p80 = por %p78, %p79
    %p81 = scmp.ne.s32.totalorder %s69, %s70
    %p82 = scmp.eq.s32.totalorder %s18, 1
    %p83 = por %p81, %p82
    %p85 = scmp.ne.s32.totalorder %s70, %s84
    %p86 = scmp.eq.s32.totalorder %s18, 0
    %p87 = por %p85, %p86
    %s89 = sadd.s32 %s88, 1
    %p92 = scmp.eq.s32.totalorder %s12, 1
    %p93 = scmp.ne.s32.totalorder %s88, %s90
    %p94 = scmp.eq.s32.totalorder %s12, 0
    %p95 = por %p93, %p94
    %p96 = scmp.ne.s32.totalorder %s88, %s90
    %p97 = scmp.eq.s32.totalorder %s17, 1
    %p98 = por %p96, %p97
    %p99 = scmp.ne.s32.totalorder %s90, %s91
    %p100 = scmp.eq.s32.totalorder %s17, 0
    %p101 = por %p99, %p100
    %p102 = scmp.ne.s32.totalorder %s90, %s91
    %p103 = scmp.eq.s32.totalorder %s18, 1
    %p104 = por %p102, %p103
    %p106 = scmp.ne.s32.totalorder %s91, %s105
    %p107 = scmp.eq.s32.totalorder %s18, 0
    %p108 = por %p106, %p107
    %s110 = sadd.s32 %s109, 1
    %p113 = scmp.eq.s32.totalorder %s12, 1
    %p114 = scmp.ne.s32.totalorder %s109, %s111
    %p115 = scmp.eq.s32.totalorder %s12, 0
    %p116 = por %p114, %p115
    %p117 = scmp.ne.s32.totalorder %s109, %s111
    %p118 = scmp.eq.s32.totalorder %s17, 1
    %p119 = por %p117, %p118
    %p120 = scmp.ne.s32.totalorder %s111, %s112
    %p121 = scmp.eq.s32.totalorder %s17, 0
    %p122 = por %p120, %p121
    %p123 = scmp.ne.s32.totalorder %s111, %s112
    %p124 = scmp.eq.s32.totalorder %s18, 1
    %p125 = por %p123, %p124
    %p127 = scmp.ne.s32.totalorder %s112, %s126
    %p128 = scmp.eq.s32.totalorder %s18, 0
    %p129 = por %p127, %p128
    %s131 = sadd.s32 %s130, 1
    %p134 = scmp.eq.s32.totalorder %s12, 1
    %p135 = scmp.ne.s32.totalorder %s130, %s132
    %p136 = scmp.eq.s32.totalorder %s12, 0
    %p137 = por %p135, %p136
    %p138 = scmp.ne.s32.totalorder %s130, %s132
    %p139 = scmp.eq.s32.totalorder %s17, 1
    %p140 = por %p138, %p139
    %p141 = scmp.ne.s32.totalorder %s132, %s133
    %p142 = scmp.eq.s32.totalorder %s17, 0
    %p143 = por %p141, %p142
    %p144 = scmp.ne.s32.totalorder %s132, %s133
    %p145 = scmp.eq.s32.totalorder %s18, 1
    %p146 = por %p144, %p145
    %p148 = scmp.ne.s32.totalorder %s133, %s147
    %p149 = scmp.eq.s32.totalorder %s18, 0
    %p150 = por %p148, %p149
    %s151 = ssub.s32 %s12, %s19
    %p152 = scmp.eq.s32.totalorder %s151, 0
    %s154 = sadd.s32 %s153, 1
    %s155 = scalar_select %p152, %s153, %s154
    %p158 = pneg %p152
    %p159 = scmp.eq.s32.totalorder %s12, 1
    %p160 = por %p158, %p159
    %p161 = scmp.ne.s32.totalorder %s153, %s156
    %p162 = scmp.eq.s32.totalorder %s12, 0
    %p163 = por %p161, %p162
    %p164 = scmp.ne.s32.totalorder %s153, %s156
    %p165 = scmp.eq.s32.totalorder %s17, 1
    %p166 = por %p164, %p165
    %p167 = scmp.ne.s32.totalorder %s156, %s157
    %p168 = scmp.eq.s32.totalorder %s17, 0
    %p169 = por %p167, %p168
    %p170 = scmp.ne.s32.totalorder %s156, %s157
    %p171 = scmp.eq.s32.totalorder %s18, 1
    %p172 = por %p170, %p171
    %p174 = scmp.ne.s32.totalorder %s157, %s173
    %p175 = scmp.eq.s32.totalorder %s18, 0
    %p176 = por %p174, %p175
    %p177 = scmp.le.s32.totalorder 1, %s12
    %p178 = scmp.lt.s32.totalorder %s12, 3
    %p179 = pnand %p177, %p178
    %p180 = pneg %p179
    // Predicated region
    $region9: #{ae_decoder2d.7} parent=5 // pred_check
      _
    $region10: #{ae_decoder2d.7} parent=5 // pred_check_branch
      %182 = sbr.rel (%p179) target = $region12
    $region11: #{ae_decoder2d.7} parent=5 // pred_region
      %s183 = ssub.s32 %s12, 1
      // Predicated region
      $region13: #{ae_decoder2d.7} parent=11 // pred_check
        %p184 = pneg %p59
      $region14: #{ae_decoder2d.7} parent=11 // pred_check_branch
        %186 = sbr.rel (%p184) target = $region16
      $region15: #{ae_decoder2d.7} parent=11 // pred_region
        _
      $region16: #{ae_decoder2d.7} parent=11 // pred_fallthru
        _
      // Predicated region
      $region17: #{ae_decoder2d.7} parent=11 // pred_check
        %p187 = pneg %p80
      $region18: #{ae_decoder2d.7} parent=11 // pred_check_branch
        %189 = sbr.rel (%p187) target = $region20
      $region19: #{ae_decoder2d.7} parent=11 // pred_region
        _
      $region20: #{ae_decoder2d.7} parent=11 // pred_fallthru
        _
      // Predicated region
      $region21: #{ae_decoder2d.7} parent=11 // pred_check
        %p190 = pneg %p101
      $region22: #{ae_decoder2d.7} parent=11 // pred_check_branch
        %192 = sbr.rel (%p190) target = $region24
      $region23: #{ae_decoder2d.7} parent=11 // pred_region
        _
      $region24: #{ae_decoder2d.7} parent=11 // pred_fallthru
        _
      // Predicated region
      $region25: #{ae_decoder2d.7} parent=11 // pred_check
        %p193 = pneg %p122
      $region26: #{ae_decoder2d.7} parent=11 // pred_check_branch
        %195 = sbr.rel (%p193) target = $region28
      $region27: #{ae_decoder2d.7} parent=11 // pred_region
        _
      $region28: #{ae_decoder2d.7} parent=11 // pred_fallthru
        _
      // Predicated region
      $region29: #{ae_decoder2d.7} parent=11 // pred_check
        %p196 = pneg %p143
      $region30: #{ae_decoder2d.7} parent=11 // pred_check_branch
        %198 = sbr.rel (%p196) target = $region32
      $region31: #{ae_decoder2d.7} parent=11 // pred_region
        _
      $region32: #{ae_decoder2d.7} parent=11 // pred_fallthru
        _
    $region12: #{ae_decoder2d.7} parent=5 // pred_fallthru
      _
    %p199 = scmp.lt.s32.totalorder %s12, 2
    // Predicated region
    $region33: #{ae_decoder2d.7} parent=5 // pred_check
      %p200 = pneg %p199
    $region34: #{ae_decoder2d.7} parent=5 // pred_check_branch
      %202 = sbr.rel (%p200) target = $region36
    $region35: #{ae_decoder2d.7} parent=5 // pred_region
      // Predicated region
      $region37: #{ae_decoder2d.7} parent=35 // pred_check
        %p203 = pneg %p32
      $region38: #{ae_decoder2d.7} parent=35 // pred_check_branch
        %205 = sbr.rel (%p203) target = $region40
      $region39: #{ae_decoder2d.7} parent=35 // pred_region
        %p206 = scmp.lt.s32.totalorder %s12, 1
        %s207 = scalar_select %p206, %s12, 1
        %s208 = smul.addr %s207, 4
        %s209 = smul.addr %s208, 4
        %s210 = scalar_lea.vmem %s0, %s209
      $region40: #{ae_decoder2d.7} parent=35 // pred_fallthru
        _
    $region36: #{ae_decoder2d.7} parent=5 // pred_fallthru
      _
    %p211 = scmp.le.s32.totalorder 1, %s12
    %p212 = scmp.lt.s32.totalorder %s12, 3
    %p213 = pnand %p211, %p212
    %p214 = pneg %p213
    // Predicated region
    $region41: #{ae_decoder2d.7} parent=5 // pred_check
      _
    $region42: #{ae_decoder2d.7} parent=5 // pred_check_branch
      %216 = sbr.rel (%p213) target = $region44
    $region43: #{ae_decoder2d.7} parent=5 // pred_region
      %s217 = ssub.s32 %s12, 1
      %p218 = scmp.lt.s32.totalorder %s17, 1
      %s219 = scalar_select %p218, %s17, 1
      %s220 = smul.addr %s219, 4
      %s221 = smul.addr %s220, 4
      %s222 = scalar_lea.vmem %s0, %s221
      %p223 = pneg %p38
      %p224 = pneg %p35
      %p225 = pneg %p59
      %p226 = pneg %p56
      %p227 = pneg %p80
      %p228 = pneg %p77
      %p229 = pneg %p101
      %p230 = pneg %p98
      %p231 = pneg %p122
      %p232 = pneg %p119
      %p233 = pneg %p143
      %p234 = pneg %p140
      %p235 = pneg %p169
      %p236 = pneg %p166
      %p237 = scmp.lt.s32.totalorder %s17, 1
      %s238 = scalar_select %p237, %s17, 1
      %s239 = smul.addr %s238, 6
      %s240 = smul.addr %s239, 8
      %s241 = scalar_lea.vmem %s6, %s240
      %p242 = scmp.lt.s32.totalorder %s17, 1
      %s243 = scalar_select %p242, %s17, 1
      %s244 = smul.addr %s243, 4
      %s245 = smul.addr %s244, 4
      %s246 = scalar_lea.vmem %s0, %s245
      %p247 = scmp.lt.s32.totalorder %s17, 1
      %s248 = scalar_select %p247, %s17, 1
      %s249 = smul.addr %s248, 6
      %s250 = smul.addr %s249, 8
      %s251 = scalar_lea.vmem %s6, %s250
      %v252 = vld [vmem:[%s246] sm:$0xff]
      %v253 = vld [vmem:[%s246 + $0x8] sm:$0xff]
      %v254 = vunpack.c.l.bf16 %v252
      %v255 = vunpack.c.h.bf16 %v252
      %v256 = vunpack.c.l.bf16 %v253
      %v257 = vunpack.c.h.bf16 %v253
      %262 = vrot.lane.b32.xlu0 %v254, 127
      %v263 = vpop.permute.xlu0 %262
      %264 = vrot.lane.b32.xlu0 %v255, 127
      %v265 = vpop.permute.xlu0 %264
      %266 = vrot.lane.b32.xlu0 %v256, 127
      %v267 = vpop.permute.xlu0 %266
      %268 = vrot.lane.b32.xlu0 %v257, 127
      %v269 = vpop.permute.xlu0 %268
      %vm270 = vcmask 1039360
      %v271 = vsel %vm270, %v263, %v265
      %v272 = vsel %vm270, %v265, %v267
      %v273 = vsel %vm270, %v267, %v269
      %277 = vrot.lane.b32.xlu0 %v254, 126
      %v278 = vpop.permute.xlu0 %277
      %279 = vrot.lane.b32.xlu0 %v255, 126
      %v280 = vpop.permute.xlu0 %279
      %281 = vrot.lane.b32.xlu0 %v256, 126
      %v282 = vpop.permute.xlu0 %281
      %283 = vrot.lane.b32.xlu0 %v257, 126
      %v284 = vpop.permute.xlu0 %283
      %vm285 = vcmask 1031168
      %v286 = vsel %vm285, %v278, %v280
      %v287 = vsel %vm285, %v280, %v282
      %v288 = vsel %vm285, %v282, %v284
      %292 = vrot.lane.b32.xlu0 %v254, 110
      %v293 = vpop.permute.xlu0 %292
      %294 = vrot.lane.b32.xlu0 %v255, 110
      %v295 = vpop.permute.xlu0 %294
      %296 = vrot.lane.b32.xlu0 %v256, 110
      %v297 = vpop.permute.xlu0 %296
      %298 = vrot.lane.b32.xlu0 %v257, 110
      %v299 = vpop.permute.xlu0 %298
      %vm300 = vcmask 900096
      %v301 = vsel %vm300, %v293, %v295
      %v302 = vsel %vm300, %v295, %v297
      %v303 = vsel %vm300, %v297, %v299
      %307 = vrot.lane.b32.xlu0 %v254, 109
      %v308 = vpop.permute.xlu0 %307
      %309 = vrot.lane.b32.xlu0 %v255, 109
      %v310 = vpop.permute.xlu0 %309
      %311 = vrot.lane.b32.xlu0 %v256, 109
      %v312 = vpop.permute.xlu0 %311
      %313 = vrot.lane.b32.xlu0 %v257, 109
      %v314 = vpop.permute.xlu0 %313
      %vm315 = vcmask 891904
      %v316 = vsel %vm315, %v308, %v310
      %v317 = vsel %vm315, %v310, %v312
      %v318 = vsel %vm315, %v312, %v314
      %322 = vrot.lane.b32.xlu0 %v254, 108
      %v323 = vpop.permute.xlu0 %322
      %324 = vrot.lane.b32.xlu0 %v255, 108
      %v325 = vpop.permute.xlu0 %324
      %326 = vrot.lane.b32.xlu0 %v256, 108
      %v327 = vpop.permute.xlu0 %326
      %328 = vrot.lane.b32.xlu0 %v257, 108
      %v329 = vpop.permute.xlu0 %328
      %vm330 = vcmask 883712
      %v331 = vsel %vm330, %v323, %v325
      %v332 = vsel %vm330, %v325, %v327
      %v333 = vsel %vm330, %v327, %v329
      %337 = vrot.lane.b32.xlu0 %v254, 92
      %v338 = vpop.permute.xlu0 %337
      %339 = vrot.lane.b32.xlu0 %v255, 92
      %v340 = vpop.permute.xlu0 %339
      %341 = vrot.lane.b32.xlu0 %v256, 92
      %v342 = vpop.permute.xlu0 %341
      %343 = vrot.lane.b32.xlu0 %v257, 92
      %v344 = vpop.permute.xlu0 %343
      %vm345 = vcmask 752640
      %v346 = vsel %vm345, %v338, %v340
      %v347 = vsel %vm345, %v340, %v342
      %v348 = vsel %vm345, %v342, %v344
      %352 = vrot.lane.b32.xlu0 %v254, 91
      %v353 = vpop.permute.xlu0 %352
      %354 = vrot.lane.b32.xlu0 %v255, 91
      %v355 = vpop.permute.xlu0 %354
      %356 = vrot.lane.b32.xlu0 %v256, 91
      %v357 = vpop.permute.xlu0 %356
      %358 = vrot.lane.b32.xlu0 %v257, 91
      %v359 = vpop.permute.xlu0 %358
      %vm360 = vcmask 744448
      %v361 = vsel %vm360, %v353, %v355
      %v362 = vsel %vm360, %v355, %v357
      %v363 = vsel %vm360, %v357, %v359
      %367 = vrot.lane.b32.xlu0 %v254, 90
      %v368 = vpop.permute.xlu0 %367
      %369 = vrot.lane.b32.xlu0 %v255, 90
      %v370 = vpop.permute.xlu0 %369
      %371 = vrot.lane.b32.xlu0 %v256, 90
      %v372 = vpop.permute.xlu0 %371
      %373 = vrot.lane.b32.xlu0 %v257, 90
      %v374 = vpop.permute.xlu0 %373
      %vm375 = vcmask 736256
      %v376 = vsel %vm375, %v368, %v370
      %v377 = vsel %vm375, %v370, %v372
      %v378 = vsel %vm375, %v372, %v374
      %v382 = vld [vmem:[%s1] sm:$0xff]
      %v383 = vld [vmem:[%s1 + $0x8] sm:$0xff]
      %vm384 = vcmask 588800
      %v386 = vsel %vm384, %v382, 0
      %v389 = vsel %vm384, %v383, 0
      %391 = vmatprep.subr.mxu0 %v255
      %392 = vmatpush1.msra.mxu0 %v254
      %393 = vmatprep.subr.mxu0 %v272
      %394 = vmatpush1.msra.mxu0 %v271
      %395 = vmatprep.subr.mxu0 %v287
      %396 = vmatpush1.msra.mxu0 %v286
      %397 = vmatprep.subr.mxu0 %v302
      %398 = vmatpush1.msra.mxu0 %v301
      %399 = vmatprep.subr.mxu0 %v317
      %400 = vmatpush1.msra.mxu0 %v316
      %401 = vmatprep.subr.mxu0 %v332
      %402 = vmatpush1.msra.mxu0 %v331
      %403 = vmatprep.subr.mxu0 %v347
      %404 = vmatpush1.msra.mxu0 %v346
      %405 = vmatprep.subr.mxu0 %v362
      %406 = vmatpush1.msra.mxu0 %v361
      %407 = vmatprep.subr.mxu0 %v377
      %408 = vmatpush1.msra.mxu0 %v376
      %409 = vmatprep.subr.mxu0 0.0
      %410 = vmatpush1.msra.mxu0 0.0
      %411 = vmatprep.subr.mxu0 0.0
      %412 = vmatpush1.msra.mxu0 0.0
      %413 = vmatprep.subr.mxu0 0.0
      %414 = vmatpush1.msra.mxu0 0.0
      %415 = vmatprep.subr.mxu0 0.0
      %416 = vmatpush1.msra.mxu0 0.0
      %417 = vmatprep.subr.mxu0 0.0
      %418 = vmatpush1.msra.mxu0 0.0
      %419 = vmatprep.subr.mxu0 0.0
      %420 = vmatpush1.msra.mxu0 0.0
      %421 = vmatprep.subr.mxu0 0.0
      %422 = vmatpush1.msra.mxu0 0.0
      %423 = vmatprep.subr.mxu0 0.0
      %424 = vmatpush1.msra.mxu0 0.0
      %425 = vmatprep.subr.mxu0 0.0
      %426 = vmatpush1.msra.mxu0 0.0
      %427 = vmatprep.subr.mxu0 0.0
      %428 = vmatpush1.msra.mxu0 0.0
      %429 = vmatprep.subr.mxu0 0.0
      %430 = vmatpush1.msra.mxu0 0.0
      %431 = vmatprep.subr.mxu0 0.0
      %432 = vmatpush1.msra.mxu0 0.0
      %433 = vmatprep.subr.mxu0 0.0
      %434 = vmatpush1.msra.mxu0 0.0
      %435 = vmatprep.subr.mxu0 0.0
      %436 = vmatpush1.msra.mxu0 0.0
      %437 = vmatprep.subr.mxu0 0.0
      %438 = vmatpush1.msra.mxu0 0.0
      %439 = vmatprep.subr.mxu0 0.0
      %440 = vmatpush1.msra.mxu0 0.0
      %441 = vmatprep.subr.mxu0 0.0
      %442 = vmatpush1.msra.mxu0 0.0
      %443 = vmatprep.subr.mxu0 0.0
      %444 = vmatpush1.msra.mxu0 0.0
      %445 = vmatprep.subr.mxu0 0.0
      %446 = vmatpush1.msra.mxu0 0.0
      %447 = vmatprep.subr.mxu0 0.0
      %448 = vmatpush1.msra.mxu0 0.0
      %449 = vmatprep.subr.mxu0 0.0
      %450 = vmatpush1.msra.mxu0 0.0
      %451 = vmatprep.subr.mxu0 0.0
      %452 = vmatpush1.msra.mxu0 0.0
      %453 = vmatprep.subr.mxu0 0.0
      %454 = vmatpush1.msra.mxu0 0.0
      %455 = vmatprep.mubr.f32.mxu0 0.0
      %456 = vmatmul.mubr.f32.gmra.mrb[0].mxu0 %v386
      %v457 = vpop.f32.mrb[0].mxu0
      %v458 = vadd.f32 0.0, %v457
      %v459 = vpop.f32.mrb[0].mxu0
      %v460 = vadd.f32 0.0, %v459
      %461 = vmatprep.mubr.f32.mxu0 0.0
      %462 = vmatmul.mubr.f32.gmra.mrb[0].mxu0 %v389
      %v463 = vpop.f32.mrb[0].mxu0
      %v464 = vadd.f32 0.0, %v463
      %v465 = vpop.f32.mrb[0].mxu0
      %v466 = vadd.f32 0.0, %v465
      %467 = vdwg.mxu0
      %468 = vmatprep.subr.mxu0 0.0
      %469 = vmatpush1.msra.mxu0 %v256
      %470 = vmatprep.subr.mxu0 0.0
      %471 = vmatpush1.msra.mxu0 %v273
      %472 = vmatprep.subr.mxu0 0.0
      %473 = vmatpush1.msra.mxu0 %v288
      %474 = vmatprep.subr.mxu0 0.0
      %475 = vmatpush1.msra.mxu0 %v303
      %476 = vmatprep.subr.mxu0 0.0
      %477 = vmatpush1.msra.mxu0 %v318
      %478 = vmatprep.subr.mxu0 0.0
      %479 = vmatpush1.msra.mxu0 %v333
      %480 = vmatprep.subr.mxu0 0.0
      %481 = vmatpush1.msra.mxu0 %v348
      %482 = vmatprep.subr.mxu0 0.0
      %483 = vmatpush1.msra.mxu0 %v363
      %484 = vmatprep.subr.mxu0 0.0
      %485 = vmatpush1.msra.mxu0 %v378
      %486 = vmatprep.subr.mxu0 0.0
      %487 = vmatpush1.msra.mxu0 0.0
      %488 = vmatprep.subr.mxu0 0.0
      %489 = vmatpush1.msra.mxu0 0.0
      %490 = vmatprep.subr.mxu0 0.0
      %491 = vmatpush1.msra.mxu0 0.0
      %492 = vmatprep.subr.mxu0 0.0
      %493 = vmatpush1.msra.mxu0 0.0
      %494 = vmatprep.subr.mxu0 0.0
      %495 = vmatpush1.msra.mxu0 0.0
      %496 = vmatprep.subr.mxu0 0.0
      %497 = vmatpush1.msra.mxu0 0.0
      %498 = vmatprep.subr.mxu0 0.0
      %499 = vmatpush1.msra.mxu0 0.0
      %500 = vmatprep.subr.mxu0 0.0
      %501 = vmatpush1.msra.mxu0 0.0
      %502 = vmatprep.subr.mxu0 0.0
      %503 = vmatpush1.msra.mxu0 0.0
      %504 = vmatprep.subr.mxu0 0.0
      %505 = vmatpush1.msra.mxu0 0.0
      %506 = vmatprep.subr.mxu0 0.0
      %507 = vmatpush1.msra.mxu0 0.0
      %508 = vmatprep.subr.mxu0 0.0
      %509 = vmatpush1.msra.mxu0 0.0
      %510 = vmatprep.subr.mxu0 0.0
      %511 = vmatpush1.msra.mxu0 0.0
      %512 = vmatprep.subr.mxu0 0.0
      %513 = vmatpush1.msra.mxu0 0.0
      %514 = vmatprep.subr.mxu0 0.0
      %515 = vmatpush1.msra.mxu0 0.0
      %516 = vmatprep.subr.mxu0 0.0
      %517 = vmatpush1.msra.mxu0 0.0
      %518 = vmatprep.subr.mxu0 0.0
      %519 = vmatpush1.msra.mxu0 0.0
      %520 = vmatprep.subr.mxu0 0.0
      %521 = vmatpush1.msra.mxu0 0.0
      %522 = vmatprep.subr.mxu0 0.0
      %523 = vmatpush1.msra.mxu0 0.0
      %524 = vmatprep.subr.mxu0 0.0
      %525 = vmatpush1.msra.mxu0 0.0
      %526 = vmatprep.subr.mxu0 0.0
      %527 = vmatpush1.msra.mxu0 0.0
      %528 = vmatprep.subr.mxu0 0.0
      %529 = vmatpush1.msra.mxu0 0.0
      %530 = vmatprep.subr.mxu0 0.0
      %531 = vmatpush1.msra.mxu0 0.0
      %532 = vmatprep.mubr.f32.mxu0 0.0
      %533 = vmatmul.mubr.f32.gmra.mrb[0].mxu0 %v386
      %v534 = vpop.f32.mrb[0].mxu0
      %v535 = vadd.f32 0.0, %v534
      %v536 = vpop.f32.mrb[0].mxu0
      %537 = vmatprep.mubr.f32.mxu0 0.0
      %538 = vmatmul.mubr.f32.gmra.mrb[0].mxu0 %v389
      %v539 = vpop.f32.mrb[0].mxu0
      %v540 = vadd.f32 0.0, %v539
      %v541 = vpop.f32.mrb[0].mxu0
      %542 = vdwg.mxu0
      %v543 = vld [vmem:[%s2] sm:$0xff]
      %v544 = vld [vmem:[%s2 + $0x8] sm:$0xff]
      %546 = vset.pattern.permute.xlu0 0
      %547 = vperm.xlu0 %546, %v543
      %v548 = vpop.permute.xlu0 %547
      %551 = vset.pattern.permute.xlu0 0
      %552 = vperm.xlu0 %551, %v544
      %v553 = vpop.permute.xlu0 %552
      %v555 = vmul.f32 %v458, %v548
      %v556 = vmul.f32 %v460, %v548
      %v557 = vmul.f32 %v535, %v548
      %v558 = vmul.f32 %v464, %v553
      %v559 = vmul.f32 %v466, %v553
      %v560 = vmul.f32 %v540, %v553
      %v561 = vld [vmem:[%s3] sm:$0xff]
      %v562 = vld [vmem:[%s3 + $0x8] sm:$0xff]
      %564 = vset.pattern.permute.xlu0 0
      %565 = vperm.xlu0 %564, %v561
      %v566 = vpop.permute.xlu0 %565
      %569 = vset.pattern.permute.xlu0 0
      %570 = vperm.xlu0 %569, %v562
      %v571 = vpop.permute.xlu0 %570
      %v573 = vadd.f32 %v555, %v566
      %v574 = vadd.f32 %v556, %v566
      %v575 = vadd.f32 %v557, %v566
      %v576 = vadd.f32 %v558, %v571
      %v577 = vadd.f32 %v559, %v571
      %v578 = vadd.f32 %v560, %v571
      %v579 = vmax.f32 %v573, 0.0
      %v580 = vmax.f32 %v574, 0.0
      %v581 = vmax.f32 %v575, 0.0
      %v582 = vmax.f32 %v576, 0.0
      %v583 = vmax.f32 %v577, 0.0
      %v584 = vmax.f32 %v578, 0.0
      %v585 = vld [vmem:[%s4] sm:$0xff]
      %v586 = vld [vmem:[%s4 + $0x8] sm:$0xf]
      %v587 = vld [vmem:[%s5] sm:$0xff]
      %v588 = vld [vmem:[%s5 + $0x8] sm:$0xf]
      %590 = vset.pattern.permute.xlu0 0
      %591 = vperm.xlu0 %590, %v587
      %v592 = vpop.permute.xlu0 %591
      %595 = vset.pattern.permute.xlu0 0
      %596 = vperm.xlu0 %595, %v588
      %v597 = vpop.permute.xlu0 %596
      %vm599 = vcmask 130048
      %v601 = vsel %vm599, %v585, 0
      %v604 = vsel %vm599, %v586, 0
      %606 = vmatprep.subr.mxu0 %v580
      %607 = vmatpush1.msra.mxu0 %v579
      %608 = vmatprep.subr.mxu0 %v583
      %609 = vmatpush1.msra.mxu0 %v582
      %610 = vmatprep.subr.mxu0 0.0
      %611 = vmatpush1.msra.mxu0 0.0
      %612 = vmatprep.subr.mxu0 0.0
      %613 = vmatpush1.msra.mxu0 0.0
      %614 = vmatprep.subr.mxu0 0.0
      %615 = vmatpush1.msra.mxu0 0.0
      %616 = vmatprep.subr.mxu0 0.0
      %617 = vmatpush1.msra.mxu0 0.0
      %618 = vmatprep.subr.mxu0 0.0
      %619 = vmatpush1.msra.mxu0 0.0
      %620 = vmatprep.subr.mxu0 0.0
      %621 = vmatpush1.msra.mxu0 0.0
      %622 = vmatprep.subr.mxu0 0.0
      %623 = vmatpush1.msra.mxu0 0.0
      %624 = vmatprep.subr.mxu0 0.0
      %625 = vmatpush1.msra.mxu0 0.0
      %626 = vmatprep.subr.mxu0 0.0
      %627 = vmatpush1.msra.mxu0 0.0
      %628 = vmatprep.subr.mxu0 0.0
      %629 = vmatpush1.msra.mxu0 0.0
      %630 = vmatprep.subr.mxu0 0.0
      %631 = vmatpush1.msra.mxu0 0.0
      %632 = vmatprep.subr.mxu0 0.0
      %633 = vmatpush1.msra.mxu0 0.0
      %634 = vmatprep.subr.mxu0 0.0
      %635 = vmatpush1.msra.mxu0 0.0
      %636 = vmatprep.subr.mxu0 0.0
      %637 = vmatpush1.msra.mxu0 0.0
      %638 = vmatprep.subr.mxu0 0.0
      %639 = vmatpush1.msra.mxu0 0.0
      %640 = vmatprep.subr.mxu0 0.0
      %641 = vmatpush1.msra.mxu0 0.0
      %642 = vmatprep.subr.mxu0 0.0
      %643 = vmatpush1.msra.mxu0 0.0
      %644 = vmatprep.subr.mxu0 0.0
      %645 = vmatpush1.msra.mxu0 0.0
      %646 = vmatprep.subr.mxu0 0.0
      %647 = vmatpush1.msra.mxu0 0.0
      %648 = vmatprep.subr.mxu0 0.0
      %649 = vmatpush1.msra.mxu0 0.0
      %650 = vmatprep.subr.mxu0 0.0
      %651 = vmatpush1.msra.mxu0 0.0
      %652 = vmatprep.subr.mxu0 0.0
      %653 = vmatpush1.msra.mxu0 0.0
      %654 = vmatprep.subr.mxu0 0.0
      %655 = vmatpush1.msra.mxu0 0.0
      %656 = vmatprep.subr.mxu0 0.0
      %657 = vmatpush1.msra.mxu0 0.0
      %658 = vmatprep.subr.mxu0 0.0
      %659 = vmatpush1.msra.mxu0 0.0
      %660 = vmatprep.subr.mxu0 0.0
      %661 = vmatpush1.msra.mxu0 0.0
      %662 = vmatprep.subr.mxu0 0.0
      %663 = vmatpush1.msra.mxu0 0.0
      %664 = vmatprep.subr.mxu0 0.0
      %665 = vmatpush1.msra.mxu0 0.0
      %666 = vmatprep.subr.mxu0 0.0
      %667 = vmatpush1.msra.mxu0 0.0
      %668 = vmatprep.subr.mxu0 0.0
      %669 = vmatpush1.msra.mxu0 0.0
      %670 = vmatprep.mubr.f32.mxu0 0.0
      %671 = vmatmul.mubr.f32.gmra.mrb[0].mxu0 %v601
      %v672 = vpop.f32.mrb[0].mxu0
      %v673 = vadd.f32 %v592, %v672
      %v674 = vpop.f32.mrb[0].mxu0
      %v675 = vadd.f32 %v592, %v674
      %676 = vmatprep.mubr.f32.mxu0 0.0
      %677 = vmatmul.mubr.f32.gmra.mrb[0].mxu0 %v604
      %v678 = vpop.f32.mrb[0].mxu0
      %v679 = vadd.f32 %v597, %v678
      %v680 = vpop.f32.mrb[0].mxu0
      %v681 = vadd.f32 %v597, %v680
      %682 = vdwg.mxu0
      %683 = vmatprep.subr.mxu0 0.0
      %684 = vmatpush1.msra.mxu0 %v581
      %685 = vmatprep.subr.mxu0 0.0
      %686 = vmatpush1.msra.mxu0 %v584
      %687 = vmatprep.subr.mxu0 0.0
      %688 = vmatpush1.msra.mxu0 0.0
      %689 = vmatprep.subr.mxu0 0.0
      %690 = vmatpush1.msra.mxu0 0.0
      %691 = vmatprep.subr.mxu0 0.0
      %692 = vmatpush1.msra.mxu0 0.0
      %693 = vmatprep.subr.mxu0 0.0
      %694 = vmatpush1.msra.mxu0 0.0
      %695 = vmatprep.subr.mxu0 0.0
      %696 = vmatpush1.msra.mxu0 0.0
      %697 = vmatprep.subr.mxu0 0.0
      %698 = vmatpush1.msra.mxu0 0.0
      %699 = vmatprep.subr.mxu0 0.0
      %700 = vmatpush1.msra.mxu0 0.0
      %701 = vmatprep.subr.mxu0 0.0
      %702 = vmatpush1.msra.mxu0 0.0
      %703 = vmatprep.subr.mxu0 0.0
      %704 = vmatpush1.msra.mxu0 0.0
      %705 = vmatprep.subr.mxu0 0.0
      %706 = vmatpush1.msra.mxu0 0.0
      %707 = vmatprep.subr.mxu0 0.0
      %708 = vmatpush1.msra.mxu0 0.0
      %709 = vmatprep.subr.mxu0 0.0
      %710 = vmatpush1.msra.mxu0 0.0
      %711 = vmatprep.subr.mxu0 0.0
      %712 = vmatpush1.msra.mxu0 0.0
      %713 = vmatprep.subr.mxu0 0.0
      %714 = vmatpush1.msra.mxu0 0.0
      %715 = vmatprep.subr.mxu0 0.0
      %716 = vmatpush1.msra.mxu0 0.0
      %717 = vmatprep.subr.mxu0 0.0
      %718 = vmatpush1.msra.mxu0 0.0
      %719 = vmatprep.subr.mxu0 0.0
      %720 = vmatpush1.msra.mxu0 0.0
      %721 = vmatprep.subr.mxu0 0.0
      %722 = vmatpush1.msra.mxu0 0.0
      %723 = vmatprep.subr.mxu0 0.0
      %724 = vmatpush1.msra.mxu0 0.0
      %725 = vmatprep.subr.mxu0 0.0
      %726 = vmatpush1.msra.mxu0 0.0
      %727 = vmatprep.subr.mxu0 0.0
      %728 = vmatpush1.msra.mxu0 0.0
      %729 = vmatprep.subr.mxu0 0.0
      %730 = vmatpush1.msra.mxu0 0.0
      %731 = vmatprep.subr.mxu0 0.0
      %732 = vmatpush1.msra.mxu0 0.0
      %733 = vmatprep.subr.mxu0 0.0
      %734 = vmatpush1.msra.mxu0 0.0
      %735 = vmatprep.subr.mxu0 0.0
      %736 = vmatpush1.msra.mxu0 0.0
      %737 = vmatprep.subr.mxu0 0.0
      %738 = vmatpush1.msra.mxu0 0.0
      %739 = vmatprep.subr.mxu0 0.0
      %740 = vmatpush1.msra.mxu0 0.0
      %741 = vmatprep.subr.mxu0 0.0
      %742 = vmatpush1.msra.mxu0 0.0
      %743 = vmatprep.subr.mxu0 0.0
      %744 = vmatpush1.msra.mxu0 0.0
      %745 = vmatprep.subr.mxu0 0.0
      %746 = vmatpush1.msra.mxu0 0.0
      %747 = vmatprep.mubr.f32.mxu0 0.0
      %748 = vmatmul.mubr.f32.gmra.mrb[0].mxu0 %v601
      %v749 = vpop.f32.mrb[0].mxu0
      %v750 = vadd.f32 %v592, %v749
      %v751 = vpop.f32.mrb[0].mxu0
      %752 = vmatprep.mubr.f32.mxu0 0.0
      %753 = vmatmul.mubr.f32.gmra.mrb[0].mxu0 %v604
      %v754 = vpop.f32.mrb[0].mxu0
      %v755 = vadd.f32 %v597, %v754
      %v756 = vpop.f32.mrb[0].mxu0
      %757 = vdwg.mxu0
      %758 = vst [vmem:[%s251] sm:$0xff] %v673
      %759 = vst [vmem:[%s251 + $0x8] sm:$0xff] %v675
      %760 = vst [vmem:[%s251 + $0x10] sm:$0xff] %v750
      %761 = vst [vmem:[%s251 + $0x18] sm:$0xf] %v679
      %762 = vst [vmem:[%s251 + $0x20] sm:$0xf] %v681
      %763 = vst [vmem:[%s251 + $0x28] sm:$0xf] %v755
      %p764 = scmp.lt.s32.totalorder %s17, 1
      %s765 = scalar_select %p764, %s17, 1
      %s766 = smul.addr %s765, 6
      %s767 = smul.addr %s766, 8
      %s768 = scalar_lea.vmem %s6, %s767
      // Predicated region
      $region45: #{ae_decoder2d.7} parent=43 // pred_check
        %p769 = pneg %p166
      $region46: #{ae_decoder2d.7} parent=43 // pred_check_branch
        %771 = sbr.rel (%p769) target = $region48
      $region47: #{ae_decoder2d.7} parent=43 // pred_region
        _
      $region48: #{ae_decoder2d.7} parent=43 // pred_fallthru
        _
    $region44: #{ae_decoder2d.7} parent=5 // pred_fallthru
      _
    %p772 = scmp.le.s32.totalorder 2, %s12
    // Predicated region
    $region49: #{ae_decoder2d.7} parent=5 // pred_check
      %p773 = pneg %p772
    $region50: #{ae_decoder2d.7} parent=5 // pred_check_branch
      %775 = sbr.rel (%p773) target = $region52
    $region51: #{ae_decoder2d.7} parent=5 // pred_region
      %s776 = ssub.s32 %s12, 2
      // Predicated region
      $region53: #{ae_decoder2d.7} parent=51 // pred_check
        %p777 = pneg %p172
      $region54: #{ae_decoder2d.7} parent=51 // pred_check_branch
        %779 = sbr.rel (%p777) target = $region56
      $region55: #{ae_decoder2d.7} parent=51 // pred_region
        %p780 = scmp.lt.s32.totalorder %s18, 1
        %s781 = scalar_select %p780, %s18, 1
        %s782 = smul.addr %s781, 6
        %s783 = smul.addr %s782, 8
        %s784 = scalar_lea.vmem %s6, %s783
      $region56: #{ae_decoder2d.7} parent=51 // pred_fallthru
        _
    $region52: #{ae_decoder2d.7} parent=5 // pred_fallthru
      _
  $region6: #{ae_decoder2d.7} parent=0 // loop_footer
    %s16 = sadd.s32 1, %s12
  $region7: #{ae_decoder2d.7} parent=0 // loop_footer_branch
    %11 = sbr.rel target = $region3
  $region8: #{ae_decoder2d.7} parent=0 // loop_exit
    _

</llo_original>
